<compile_context>
chip_gen: v7x
topology: tpu7x:2x2x1
jax: 0.10.0
libtpu: 0.0.40
codegen_flags: <defaults>
</compile_context>

<pallas_src>
import functools

import jax
import jax.numpy as jnp
from jax.experimental import pallas as pl
from jax.experimental.pallas import tpu as pltpu


def _spike_block_kernel(x_ref, wb1_ref, s1_ref, b1_ref, wb2_ref, s2_ref, b2_ref,
                        o_ref, pad_ref, *, H, W, C,
                        thresh, decay, init_mem, shift):
    # x_ref:   (1, H, W*C)   f32 input slab for one batch element (lane-dense)
    # wb*_ref: (3, W*C, W*C) bf16 banded conv weights (one matrix per ky)
    # s*/b*:   (1, W*C)      f32 folded-BN scale / bias, tiled along W
    # o_ref:   (1, H, W*C)   f32 output spikes (0.0 / 1.0)
    # pad_ref: (H+2, W*C)    f32 VMEM scratch with a zero top/bottom halo row
    L = W * C

    # Zero the halo rows every grid step.  (Do NOT gate this on program_id==0:
    # with a "parallel" batch axis the grid may be split across TensorCores and
    # some cores never see step 0.)
    zrow = jnp.zeros((1, L), jnp.float32)
    pad_ref[0:1, :] = zrow
    pad_ref[H + 1:H + 2, :] = zrow

    def conv_bn(wb_ref, scale_ref, bias_ref):
        # 3x3 same-padded conv as 3 fat MXU matmuls against banded weights:
        # out[y, x*C+co] = sum_ky  pad[y+ky, :] @ wb[ky][:, x*C+co]
        acc = jnp.zeros((H, L), jnp.float32)
        for ky in range(3):
            lhs = pad_ref[ky:ky + H, :].astype(jnp.bfloat16)
            acc = acc + jnp.dot(lhs, wb_ref[ky],
                                preferred_element_type=jnp.float32)
        return acc * scale_ref[...] + bias_ref[...]        # folded BN (eval)

    x = x_ref[0]                                           # (H, W*C) f32

    # ---- LIF cell 1: conv1 -> BN1 -> spike (no residual) ----
    pad_ref[1:H + 1, :] = x
    u1 = conv_bn(wb1_ref, s1_ref, b1_ref)
    mem1 = decay[0] * init_mem[0] + u1
    spike1 = (mem1 + shift[0] >= thresh[0]).astype(jnp.float32)

    # ---- LIF cell 2: conv2 -> BN2 -> + shortcut(x) -> spike ----
    pad_ref[1:H + 1, :] = spike1                           # reuse same scratch
    u2 = conv_bn(wb2_ref, s2_ref, b2_ref)
    mem2 = decay[1] * init_mem[1] + (u2 + x)               # identity shortcut
    o_ref[0] = (mem2 + shift[1] >= thresh[1]).astype(jnp.float32)


def _banded_conv_weights(w, W):
    """Lower HWIO 3x3 weights (3, 3, Cin, Cout) into per-ky banded matrices
    (3, W*Cin, W*Cout) so a stride-1, pad-1 conv along width becomes a single
    matmul per kernel row.  Width zero-padding is implicit in the band."""
    Kh, Kw, Cin, Cout = w.shape
    wb = jnp.zeros((Kh, W, Cin, W, Cout), jnp.float32)
    for kx in range(Kw):
        # band[p, x] = 1  iff  p == x + kx - 1  (and 0 <= p < W)
        band = jnp.eye(W, W, k=1 - kx, dtype=jnp.float32)
        wb = wb + jnp.einsum('px,kio->kpixo', band, w[:, kx].astype(jnp.float32))
    return wb.reshape(Kh, W * Cin, W * Cout)


def fold_bn(gamma, beta, mean, var, eps=1e-5):
    scale = gamma / jnp.sqrt(var + eps)
    bias = beta - mean * scale
    return scale[None, :], bias[None, :]                   # (1, C)


def prepare_params(p, W):
    """One-time parameter preprocessing into the kernel's layout:
    banded bf16 conv weights and width-tiled BN scale/bias."""
    def tile_wc(v):                                        # (1, C) -> (1, W*C)
        return jnp.tile(v, (1, W)).astype(jnp.float32)
    return {
        "wb1": _banded_conv_weights(p["w1"], W).astype(jnp.bfloat16),
        "wb2": _banded_conv_weights(p["w2"], W).astype(jnp.bfloat16),
        "scale1": tile_wc(p["scale1"]), "bias1": tile_wc(p["bias1"]),
        "scale2": tile_wc(p["scale2"]), "bias2": tile_wc(p["bias2"]),
        "thresh": tuple(float(t) for t in p["thresh"]),
        "decay": tuple(float(t) for t in p["decay"]),
        "init_mem": tuple(float(t) for t in p["init_mem"]),
        "shift": tuple(float(t) for t in p["shift"]),
    }


def spike_basic_block(x_nchw, kp):
    """SpikeBasicBlock forward.  NCHW in / NCHW out (PyTorch convention);
    internally a lane-dense (H, W*C) slab per image."""
    B, C, H, W = x_nchw.shape
    L = W * C
    # NHWC then flatten (W, C) -> W*C: a metadata-only reshape, no jnp.pad copy.
    x = jnp.transpose(x_nchw, (0, 2, 3, 1)).reshape(B, H, L).astype(jnp.float32)

    kernel = functools.partial(
        _spike_block_kernel, H=H, W=W, C=C,
        thresh=kp["thresh"], decay=kp["decay"],
        init_mem=kp["init_mem"], shift=kp["shift"])

    out = pl.pallas_call(
        kernel,
        out_shape=jax.ShapeDtypeStruct((B, H, L), jnp.float32),
        grid_spec=pltpu.PrefetchScalarGridSpec(
            num_scalar_prefetch=0,
            grid=(B,),
            in_specs=[
                pl.BlockSpec((1, H, L), lambda b: (b, 0, 0)),     # x
                pl.BlockSpec((3, L, L), lambda b: (0, 0, 0)),     # wb1 (resident)
                pl.BlockSpec((1, L), lambda b: (0, 0)),           # scale1
                pl.BlockSpec((1, L), lambda b: (0, 0)),           # bias1
                pl.BlockSpec((3, L, L), lambda b: (0, 0, 0)),     # wb2 (resident)
                pl.BlockSpec((1, L), lambda b: (0, 0)),           # scale2
                pl.BlockSpec((1, L), lambda b: (0, 0)),           # bias2
            ],
            out_specs=pl.BlockSpec((1, H, L), lambda b: (b, 0, 0)),
            scratch_shapes=[pltpu.VMEM((H + 2, L), jnp.float32)],
        ),
        compiler_params=pltpu.CompilerParams(
            dimension_semantics=("parallel",),
            vmem_limit_bytes=32 * 1024 * 1024),
    )(x, kp["wb1"], kp["scale1"], kp["bias1"],
      kp["wb2"], kp["scale2"], kp["bias2"])

    return jnp.transpose(out.reshape(B, H, W, C), (0, 3, 1, 2))


def init_params(key, cin, cout):
    """Deterministic synthetic parameters matching a BasicBlock(conv+BN)x2."""
    assert cin == cout, "identity shortcut requires in_planes == planes"
    ks = jax.random.split(key, 10)
    fan1 = 3 * 3 * cin
    fan2 = 3 * 3 * cout
    w1 = jax.random.normal(ks[0], (3, 3, cin, cout), jnp.float32) * (2.0 / fan1) ** 0.5
    w2 = jax.random.normal(ks[1], (3, 3, cout, cout), jnp.float32) * (2.0 / fan2) ** 0.5
    g1 = 1.0 + 0.1 * jax.random.normal(ks[2], (cout,), jnp.float32)
    b1 = 0.1 * jax.random.normal(ks[3], (cout,), jnp.float32)
    m1 = 0.1 * jax.random.normal(ks[4], (cout,), jnp.float32)
    v1 = 1.0 + 0.1 * jax.random.uniform(ks[5], (cout,), jnp.float32)
    g2 = 1.0 + 0.1 * jax.random.normal(ks[6], (cout,), jnp.float32)
    b2 = 0.1 * jax.random.normal(ks[7], (cout,), jnp.float32)
    m2 = 0.1 * jax.random.normal(ks[8], (cout,), jnp.float32)
    v2 = 1.0 + 0.1 * jax.random.uniform(ks[9], (cout,), jnp.float32)
    s1, bi1 = fold_bn(g1, b1, m1, v1)
    s2, bi2 = fold_bn(g2, b2, m2, v2)
    return {
        "w1": w1, "scale1": s1, "bias1": bi1,
        "w2": w2, "scale2": s2, "bias2": bi2,
        # LIF hyper-parameters per layer (SpikeBasicBlock.__init__ args)
        "thresh": [0.5, 0.5],
        "decay": [0.25, 0.25],
        "init_mem": [0.0, 0.0],
        "shift": [0.0, 0.0],
    }


if __name__ == "__main__":
    key = jax.random.PRNGKey(0)
    k_x, k_p = jax.random.split(key)
    B, C, H, W = 2, 16, 16, 16
    x = jax.random.normal(k_x, (B, C, H, W), jnp.float32)
    raw_params = init_params(k_p, C, C)
    params = prepare_params(raw_params, W)

    out = spike_basic_block(x, params)
    out = jax.block_until_ready(out)

    assert out.shape == (B, C, H, W)
    assert out.dtype == jnp.float32
    # spikes are binary
    assert bool(jnp.all((out == 0.0) | (out == 1.0)))
    print("KERNEL_OK")
</pallas_src>

<mosaic_0001>
module attributes {stable_mosaic.version = 11 : i64} {
  func.func @_spike_block_kernel(%arg0: i32, %arg1: memref<1x16x256xf32, #tpu.memory_space<vmem>>, %arg2: memref<3x256x256xbf16, #tpu.memory_space<vmem>>, %arg3: memref<1x256xf32, #tpu.memory_space<vmem>>, %arg4: memref<1x256xf32, #tpu.memory_space<vmem>>, %arg5: memref<3x256x256xbf16, #tpu.memory_space<vmem>>, %arg6: memref<1x256xf32, #tpu.memory_space<vmem>>, %arg7: memref<1x256xf32, #tpu.memory_space<vmem>>, %arg8: memref<1x16x256xf32, #tpu.memory_space<vmem>>, %arg9: memref<18x256xf32, #tpu.memory_space<vmem>>) attributes {dimension_semantics = [#tpu.dimension_semantics<parallel>], iteration_bounds = array<i64: 2>, scalar_prefetch = 0 : i64, scratch_operands = 1 : i64, tpu.core_type = #tpu.core_type<tc>, window_params = [{transform_indices = @transform_0, window_bounds = array<i64: 1, 16, 256>}, {pipeline_mode = #tpu.pipeline_mode<synchronous>, transform_indices = @transform_1, window_bounds = array<i64: 3, 256, 256>}, {pipeline_mode = #tpu.pipeline_mode<synchronous>, transform_indices = @transform_2, window_bounds = array<i64: 1, 256>}, {pipeline_mode = #tpu.pipeline_mode<synchronous>, transform_indices = @transform_3, window_bounds = array<i64: 1, 256>}, {pipeline_mode = #tpu.pipeline_mode<synchronous>, transform_indices = @transform_4, window_bounds = array<i64: 3, 256, 256>}, {pipeline_mode = #tpu.pipeline_mode<synchronous>, transform_indices = @transform_5, window_bounds = array<i64: 1, 256>}, {pipeline_mode = #tpu.pipeline_mode<synchronous>, transform_indices = @transform_6, window_bounds = array<i64: 1, 256>}, {transform_indices = @transform_7, window_bounds = array<i64: 1, 16, 256>}]} {
    %cst = arith.constant 0.000000e+00 : f32
    %0 = vector.broadcast %cst : f32 to vector<1x256xf32>
    %c0 = arith.constant 0 : index
    %c0_0 = arith.constant 0 : index
    %1 = vector.load %arg9[%c0, %c0_0] : memref<18x256xf32, #tpu.memory_space<vmem>>, vector<1x256xf32>
    tpu.vector_store %arg9[%c0, %c0_0], %0 {strides = array<i32>} : memref<18x256xf32, #tpu.memory_space<vmem>>, vector<1x256xf32>,
    %c17 = arith.constant 17 : index
    %c0_1 = arith.constant 0 : index
    %2 = vector.load %arg9[%c17, %c0_1] : memref<18x256xf32, #tpu.memory_space<vmem>>, vector<1x256xf32>
    tpu.vector_store %arg9[%c17, %c0_1], %0 {strides = array<i32>} : memref<18x256xf32, #tpu.memory_space<vmem>>, vector<1x256xf32>,
    %c0_2 = arith.constant 0 : index
    %c0_3 = arith.constant 0 : index
    %c0_4 = arith.constant 0 : index
    %3 = vector.load %arg1[%c0_2, %c0_3, %c0_4] : memref<1x16x256xf32, #tpu.memory_space<vmem>>, vector<1x16x256xf32>
    %4 = vector.shape_cast %3 : vector<1x16x256xf32> to vector<16x256xf32>
    %c1 = arith.constant 1 : index
    %c0_5 = arith.constant 0 : index
    %5 = vector.load %arg9[%c1, %c0_5] : memref<18x256xf32, #tpu.memory_space<vmem>>, vector<16x256xf32>
    tpu.vector_store %arg9[%c1, %c0_5], %4 {strides = array<i32>} : memref<18x256xf32, #tpu.memory_space<vmem>>, vector<16x256xf32>,
    %cst_6 = arith.constant 0.000000e+00 : f32
    %6 = vector.broadcast %cst_6 : f32 to vector<16x256xf32>
    %c0_7 = arith.constant 0 : index
    %c0_8 = arith.constant 0 : index
    %7 = vector.load %arg9[%c0_7, %c0_8] : memref<18x256xf32, #tpu.memory_space<vmem>>, vector<16x256xf32>
    %8 = arith.truncf %7 : vector<16x256xf32> to vector<16x256xbf16>
    %c0_9 = arith.constant 0 : index
    %c0_10 = arith.constant 0 : index
    %c0_11 = arith.constant 0 : index
    %9 = vector.load %arg2[%c0_9, %c0_10, %c0_11] : memref<3x256x256xbf16, #tpu.memory_space<vmem>>, vector<1x256x256xbf16>
    %10 = vector.shape_cast %9 : vector<1x256x256xbf16> to vector<256x256xbf16>
    %cst_12 = arith.constant dense<0.000000e+00> : vector<16x256xf32>
    %11 = tpu.matmul %8, %10, %cst_12 {dimension_numbers = #tpu.dot_dimension_numbers<[1], [0], [0], [1], [0, 0, 1, 1], [], []>} : vector<16x256xbf16>, vector<256x256xbf16>, vector<16x256xf32> -> vector<16x256xf32>
    %12 = arith.addf %6, %11 : vector<16x256xf32>
    %c1_13 = arith.constant 1 : index
    %c0_14 = arith.constant 0 : index
    %13 = vector.load %arg9[%c1_13, %c0_14] : memref<18x256xf32, #tpu.memory_space<vmem>>, vector<16x256xf32>
    %14 = arith.truncf %13 : vector<16x256xf32> to vector<16x256xbf16>
    %c1_15 = arith.constant 1 : index
    %c0_16 = arith.constant 0 : index
    %c0_17 = arith.constant 0 : index
    %15 = vector.load %arg2[%c1_15, %c0_16, %c0_17] : memref<3x256x256xbf16, #tpu.memory_space<vmem>>, vector<1x256x256xbf16>
    %16 = vector.shape_cast %15 : vector<1x256x256xbf16> to vector<256x256xbf16>
    %cst_18 = arith.constant dense<0.000000e+00> : vector<16x256xf32>
    %17 = tpu.matmul %14, %16, %cst_18 {dimension_numbers = #tpu.dot_dimension_numbers<[1], [0], [0], [1], [0, 0, 1, 1], [], []>} : vector<16x256xbf16>, vector<256x256xbf16>, vector<16x256xf32> -> vector<16x256xf32>
    %18 = arith.addf %12, %17 : vector<16x256xf32>
    %c2 = arith.constant 2 : index
    %c0_19 = arith.constant 0 : index
    %19 = vector.load %arg9[%c2, %c0_19] : memref<18x256xf32, #tpu.memory_space<vmem>>, vector<16x256xf32>
    %20 = arith.truncf %19 : vector<16x256xf32> to vector<16x256xbf16>
    %c2_20 = arith.constant 2 : index
    %c0_21 = arith.constant 0 : index
    %c0_22 = arith.constant 0 : index
    %21 = vector.load %arg2[%c2_20, %c0_21, %c0_22] : memref<3x256x256xbf16, #tpu.memory_space<vmem>>, vector<1x256x256xbf16>
    %22 = vector.shape_cast %21 : vector<1x256x256xbf16> to vector<256x256xbf16>
    %cst_23 = arith.constant dense<0.000000e+00> : vector<16x256xf32>
    %23 = tpu.matmul %20, %22, %cst_23 {dimension_numbers = #tpu.dot_dimension_numbers<[1], [0], [0], [1], [0, 0, 1, 1], [], []>} : vector<16x256xbf16>, vector<256x256xbf16>, vector<16x256xf32> -> vector<16x256xf32>
    %24 = arith.addf %18, %23 : vector<16x256xf32>
    %c0_24 = arith.constant 0 : index
    %c0_25 = arith.constant 0 : index
    %25 = vector.load %arg3[%c0_24, %c0_25] : memref<1x256xf32, #tpu.memory_space<vmem>>, vector<1x256xf32>
    %26 = vector.broadcast %25 : vector<1x256xf32> to vector<16x256xf32>
    %27 = arith.mulf %24, %26 : vector<16x256xf32>
    %c0_26 = arith.constant 0 : index
    %c0_27 = arith.constant 0 : index
    %28 = vector.load %arg4[%c0_26, %c0_27] : memref<1x256xf32, #tpu.memory_space<vmem>>, vector<1x256xf32>
    %29 = vector.broadcast %28 : vector<1x256xf32> to vector<16x256xf32>
    %30 = arith.addf %27, %29 : vector<16x256xf32>
    %cst_28 = arith.constant 0.000000e+00 : f32
    %31 = vector.broadcast %cst_28 : f32 to vector<16x256xf32>
    %32 = arith.addf %31, %30 : vector<16x256xf32>
    %cst_29 = arith.constant 0.000000e+00 : f32
    %33 = vector.broadcast %cst_29 : f32 to vector<16x256xf32>
    %34 = arith.addf %32, %33 : vector<16x256xf32>
    %cst_30 = arith.constant 5.000000e-01 : f32
    %35 = vector.broadcast %cst_30 : f32 to vector<16x256xf32>
    %36 = arith.cmpf oge, %34, %35 : vector<16x256xf32>
    %37 = arith.extui %36 : vector<16x256xi1> to vector<16x256xi32>
    %38 = arith.sitofp %37 : vector<16x256xi32> to vector<16x256xf32>
    %c1_31 = arith.constant 1 : index
    %c0_32 = arith.constant 0 : index
    %39 = vector.load %arg9[%c1_31, %c0_32] : memref<18x256xf32, #tpu.memory_space<vmem>>, vector<16x256xf32>
    tpu.vector_store %arg9[%c1_31, %c0_32], %38 {strides = array<i32>} : memref<18x256xf32, #tpu.memory_space<vmem>>, vector<16x256xf32>,
    %cst_33 = arith.constant 0.000000e+00 : f32
    %40 = vector.broadcast %cst_33 : f32 to vector<16x256xf32>
    %c0_34 = arith.constant 0 : index
    %c0_35 = arith.constant 0 : index
    %41 = vector.load %arg9[%c0_34, %c0_35] : memref<18x256xf32, #tpu.memory_space<vmem>>, vector<16x256xf32>
    %42 = arith.truncf %41 : vector<16x256xf32> to vector<16x256xbf16>
    %c0_36 = arith.constant 0 : index
    %c0_37 = arith.constant 0 : index
    %c0_38 = arith.constant 0 : index
    %43 = vector.load %arg5[%c0_36, %c0_37, %c0_38] : memref<3x256x256xbf16, #tpu.memory_space<vmem>>, vector<1x256x256xbf16>
    %44 = vector.shape_cast %43 : vector<1x256x256xbf16> to vector<256x256xbf16>
    %cst_39 = arith.constant dense<0.000000e+00> : vector<16x256xf32>
    %45 = tpu.matmul %42, %44, %cst_39 {dimension_numbers = #tpu.dot_dimension_numbers<[1], [0], [0], [1], [0, 0, 1, 1], [], []>} : vector<16x256xbf16>, vector<256x256xbf16>, vector<16x256xf32> -> vector<16x256xf32>
    %46 = arith.addf %40, %45 : vector<16x256xf32>
    %c1_40 = arith.constant 1 : index
    %c0_41 = arith.constant 0 : index
    %47 = vector.load %arg9[%c1_40, %c0_41] : memref<18x256xf32, #tpu.memory_space<vmem>>, vector<16x256xf32>
    %48 = arith.truncf %47 : vector<16x256xf32> to vector<16x256xbf16>
    %c1_42 = arith.constant 1 : index
    %c0_43 = arith.constant 0 : index
    %c0_44 = arith.constant 0 : index
    %49 = vector.load %arg5[%c1_42, %c0_43, %c0_44] : memref<3x256x256xbf16, #tpu.memory_space<vmem>>, vector<1x256x256xbf16>
    %50 = vector.shape_cast %49 : vector<1x256x256xbf16> to vector<256x256xbf16>
    %cst_45 = arith.constant dense<0.000000e+00> : vector<16x256xf32>
    %51 = tpu.matmul %48, %50, %cst_45 {dimension_numbers = #tpu.dot_dimension_numbers<[1], [0], [0], [1], [0, 0, 1, 1], [], []>} : vector<16x256xbf16>, vector<256x256xbf16>, vector<16x256xf32> -> vector<16x256xf32>
    %52 = arith.addf %46, %51 : vector<16x256xf32>
    %c2_46 = arith.constant 2 : index
    %c0_47 = arith.constant 0 : index
    %53 = vector.load %arg9[%c2_46, %c0_47] : memref<18x256xf32, #tpu.memory_space<vmem>>, vector<16x256xf32>
    %54 = arith.truncf %53 : vector<16x256xf32> to vector<16x256xbf16>
    %c2_48 = arith.constant 2 : index
    %c0_49 = arith.constant 0 : index
    %c0_50 = arith.constant 0 : index
    %55 = vector.load %arg5[%c2_48, %c0_49, %c0_50] : memref<3x256x256xbf16, #tpu.memory_space<vmem>>, vector<1x256x256xbf16>
    %56 = vector.shape_cast %55 : vector<1x256x256xbf16> to vector<256x256xbf16>
    %cst_51 = arith.constant dense<0.000000e+00> : vector<16x256xf32>
    %57 = tpu.matmul %54, %56, %cst_51 {dimension_numbers = #tpu.dot_dimension_numbers<[1], [0], [0], [1], [0, 0, 1, 1], [], []>} : vector<16x256xbf16>, vector<256x256xbf16>, vector<16x256xf32> -> vector<16x256xf32>
    %58 = arith.addf %52, %57 : vector<16x256xf32>
    %c0_52 = arith.constant 0 : index
    %c0_53 = arith.constant 0 : index
    %59 = vector.load %arg6[%c0_52, %c0_53] : memref<1x256xf32, #tpu.memory_space<vmem>>, vector<1x256xf32>
    %60 = vector.broadcast %59 : vector<1x256xf32> to vector<16x256xf32>
    %61 = arith.mulf %58, %60 : vector<16x256xf32>
    %c0_54 = arith.constant 0 : index
    %c0_55 = arith.constant 0 : index
    %62 = vector.load %arg7[%c0_54, %c0_55] : memref<1x256xf32, #tpu.memory_space<vmem>>, vector<1x256xf32>
    %63 = vector.broadcast %62 : vector<1x256xf32> to vector<16x256xf32>
    %64 = arith.addf %61, %63 : vector<16x256xf32>
    %65 = arith.addf %64, %4 : vector<16x256xf32>
    %cst_56 = arith.constant 0.000000e+00 : f32
    %66 = vector.broadcast %cst_56 : f32 to vector<16x256xf32>
    %67 = arith.addf %66, %65 : vector<16x256xf32>
    %cst_57 = arith.constant 0.000000e+00 : f32
    %68 = vector.broadcast %cst_57 : f32 to vector<16x256xf32>
    %69 = arith.addf %67, %68 : vector<16x256xf32>
    %cst_58 = arith.constant 5.000000e-01 : f32
    %70 = vector.broadcast %cst_58 : f32 to vector<16x256xf32>
    %71 = arith.cmpf oge, %69, %70 : vector<16x256xf32>
    %72 = arith.extui %71 : vector<16x256xi1> to vector<16x256xi32>
    %73 = arith.sitofp %72 : vector<16x256xi32> to vector<16x256xf32>
    %c0_59 = arith.constant 0 : index
    %c0_60 = arith.constant 0 : index
    %c0_61 = arith.constant 0 : index
    %74 = vector.load %arg8[%c0_59, %c0_60, %c0_61] : memref<1x16x256xf32, #tpu.memory_space<vmem>>, vector<1x16x256xf32>
    %75 = vector.shape_cast %74 : vector<1x16x256xf32> to vector<16x256xf32>
    %76 = vector.shape_cast %73 : vector<16x256xf32> to vector<1x16x256xf32>
    tpu.vector_store %arg8[%c0_59, %c0_60, %c0_61], %76 {strides = array<i32>} : memref<1x16x256xf32, #tpu.memory_space<vmem>>, vector<1x16x256xf32>,
    return
  }
  func.func @transform_0(%arg0: i32) -> (i32, i32, i32) {
    %c0_i32 = arith.constant 0 : i32
    %c0_i32_0 = arith.constant 0 : i32
    %c0_i32_1 = arith.constant 0 : i32
    return %arg0, %c0_i32, %c0_i32_0 : i32, i32, i32
  }
  func.func @transform_1(%arg0: i32) -> (i32, i32, i32) {
    %c0_i32 = arith.constant 0 : i32
    %c0_i32_0 = arith.constant 0 : i32
    %c0_i32_1 = arith.constant 0 : i32
    %c0_i32_2 = arith.constant 0 : i32
    return %c0_i32, %c0_i32_0, %c0_i32_1 : i32, i32, i32
  }
  func.func @transform_2(%arg0: i32) -> (i32, i32) {
    %c0_i32 = arith.constant 0 : i32
    %c0_i32_0 = arith.constant 0 : i32
    %c0_i32_1 = arith.constant 0 : i32
    return %c0_i32, %c0_i32_0 : i32, i32
  }
  func.func @transform_3(%arg0: i32) -> (i32, i32) {
    %c0_i32 = arith.constant 0 : i32
    %c0_i32_0 = arith.constant 0 : i32
    %c0_i32_1 = arith.constant 0 : i32
    return %c0_i32, %c0_i32_0 : i32, i32
  }
  func.func @transform_4(%arg0: i32) -> (i32, i32, i32) {
    %c0_i32 = arith.constant 0 : i32
    %c0_i32_0 = arith.constant 0 : i32
    %c0_i32_1 = arith.constant 0 : i32
    %c0_i32_2 = arith.constant 0 : i32
    return %c0_i32, %c0_i32_0, %c0_i32_1 : i32, i32, i32
  }
  func.func @transform_5(%arg0: i32) -> (i32, i32) {
    %c0_i32 = arith.constant 0 : i32
    %c0_i32_0 = arith.constant 0 : i32
    %c0_i32_1 = arith.constant 0 : i32
    return %c0_i32, %c0_i32_0 : i32, i32
  }
  func.func @transform_6(%arg0: i32) -> (i32, i32) {
    %c0_i32 = arith.constant 0 : i32
    %c0_i32_0 = arith.constant 0 : i32
    %c0_i32_1 = arith.constant 0 : i32
    return %c0_i32, %c0_i32_0 : i32, i32
  }
  func.func @transform_7(%arg0: i32) -> (i32, i32, i32) {
    %c0_i32 = arith.constant 0 : i32
    %c0_i32_0 = arith.constant 0 : i32
    %c0_i32_1 = arith.constant 0 : i32
    return %arg0, %c0_i32, %c0_i32_0 : i32, i32, i32
  }
}

</mosaic_0001>

<llo_original>
// kernel: tpu_custom_call.1
$region0: #{tpu_custom_call.1}
  #allocation0 [shape = 'u32[]', space=smem, size = 0x4, offset = 0x4, fixed_abs, tag = 'smem constant byte address 0x4 - core index']
  #allocation1 [shape = 'u32[144,128]{1,0:T(1,128)}', space=vmem, size = 0x12000, scoped, tag = 'internal scratch']
  #allocation2 [shape = 'f32[18,256]{1,0:T(8,128)}', space=vmem, size = 0x6000, scoped, tag = 'scratch operand']
  %s0 = inlined_call_operand.hbm [shape: f32[2,16,256], index: 0, kind: input, shape index: {}]
  %s1 = inlined_call_operand.hbm [shape: bf16[3,256,256], index: 1, kind: input, shape index: {}]
  %s2 = inlined_call_operand.vmem [shape: f32[1,256], index: 2, kind: input, shape index: {}]
  %s3 = inlined_call_operand.vmem [shape: f32[1,256], index: 3, kind: input, shape index: {}]
  %s4 = inlined_call_operand.hbm [shape: bf16[3,256,256], index: 4, kind: input, shape index: {}]
  %s5 = inlined_call_operand.vmem [shape: f32[1,256], index: 5, kind: input, shape index: {}]
  %s6 = inlined_call_operand.vmem [shape: f32[1,256], index: 6, kind: input, shape index: {}]
  %s7 = inlined_call_operand.hbm [shape: f32[2,16,256], index: 7, kind: output, shape index: {}]
  %s8 = sld [smem:[#allocation0]]
  $region73: #{tpu_custom_call.1} parent=0
    _
  %s10 = ssub.s32 1, %s8
  %s11 = scalar_select 0, %s10, %s8
  $region1: #{tpu_custom_call.1} parent=0
    #allocation3 [shape = 'u8[32768]{0}', space=vmem, size = 0x8000, scoped, tag = 'input window, operand 0']
    #allocation4 [shape = 's32[2]{0}', space=sflag, size = 0x8, scoped, tag = 'scoped memory for tpu_custom_call.1']
    #allocation5 [shape = 's32[2]{0}', space=sflag, size = 0x8, scoped, tag = 'scoped memory for tpu_custom_call.1']
    #allocation6 [shape = 'u8[393216]{0}', space=vmem, size = 0x60000, scoped, tag = 'input window, operand 1, single buffered']
    #allocation7 [shape = 's32[1]{0}', space=sflag, size = 0x4, scoped, tag = 'scoped memory for tpu_custom_call.1']
    #allocation8 [shape = 'u8[393216]{0}', space=vmem, size = 0x60000, scoped, tag = 'input window, operand 4, single buffered']
    #allocation9 [shape = 'u8[32768]{0}', space=vmem, size = 0x8000, scoped, tag = 'output window, operand 0']
    %12 = vsyncpa [#allocation4], 0
    %s13 = scalar_lea.sflag [#allocation4], 1
    %14 = vsyncpa %s13, 0
    %15 = vsyncpa [#allocation7], 0
    %16 = vsyncpa [#allocation5], 0
    %s17 = scalar_lea.sflag [#allocation5], 1
    %18 = vsyncpa %s17, 0
    loop: start=0, step=1, limit=4
    $region2: #{tpu_custom_call.1} parent=1 // loop_pre_header
      _
    $region3: #{tpu_custom_call.1} parent=1 // loop_header
      %s20 = sphi 0, %s24
      %p21 = scmp.ge.s32.totalorder %s20, 4
      %s30 = sphi 0, %s32
      %s33 = sphi 0, %s30
      %s34 = sphi 0, %s33
      %s50 = sphi 0, %s34
      %s54 = sphi 0, %s54
      %s56 = sphi 0, %s54
      %s57 = sphi 0, %s56
      %s71 = sphi 0, %s57
      %s75 = sphi 0, %s75
      %s77 = sphi 0, %s75
      %s78 = sphi 0, %s77
      %s92 = sphi 0, %s78
      %s96 = sphi 0, %s96
      %s98 = sphi 0, %s96
      %s99 = sphi 0, %s98
      %s113 = sphi 0, %s99
      %s117 = sphi 0, %s117
      %s119 = sphi 0, %s117
      %s120 = sphi 0, %s119
      %s134 = sphi 0, %s120
      %s138 = sphi 0, %s138
      %s140 = sphi 0, %s138
      %s141 = sphi 0, %s140
      %s155 = sphi 0, %s141
      %s159 = sphi 0, %s159
      %s161 = sphi 0, %s159
      %s162 = sphi 0, %s161
      %s176 = sphi 0, %s162
      %s182 = sphi 0, %s184
      %s185 = sphi 0, %s182
      %s186 = sphi 0, %s185
      %s202 = sphi 0, %s186
    $region4: #{tpu_custom_call.1} parent=1 // loop_header_branch
      %23 = sbr.rel (%p21) target = $region8
    $region5: #{tpu_custom_call.1} parent=1 // loop_body
      %s25 = ssub.s32 %s20, 1
      %s26 = ssub.s32 %s20, 2
      %s27 = sadd.s32 %s20, 1
      %s28 = ssub.s32 %s20, %s27
      %p29 = scmp.eq.s32.totalorder %s28, 0
      %s31 = sadd.s32 %s30, 1
      %s32 = scalar_select %p29, %s30, %s31
      %p35 = pneg %p29
      %p36 = scmp.eq.s32.totalorder %s20, 1
      %p37 = por %p35, %p36
      %p38 = scmp.ne.s32.totalorder %s30, %s33
      %p39 = scmp.eq.s32.totalorder %s20, 0
      %p40 = por %p38, %p39
      %p41 = scmp.ne.s32.totalorder %s30, %s33
      %p42 = scmp.eq.s32.totalorder %s25, 1
      %p43 = por %p41, %p42
      %p44 = scmp.ne.s32.totalorder %s33, %s34
      %p45 = scmp.eq.s32.totalorder %s25, 0
      %p46 = por %p44, %p45
      %p47 = scmp.ne.s32.totalorder %s33, %s34
      %p48 = scmp.eq.s32.totalorder %s26, 1
      %p49 = por %p47, %p48
      %p51 = scmp.ne.s32.totalorder %s34, %s50
      %p52 = scmp.eq.s32.totalorder %s26, 0
      %p53 = por %p51, %p52
      %s55 = sadd.s32 %s54, 1
      %p58 = scmp.eq.s32.totalorder %s20, 1
      %p59 = scmp.ne.s32.totalorder %s54, %s56
      %p60 = scmp.eq.s32.totalorder %s20, 0
      %p61 = por %p59, %p60
      %p62 = scmp.ne.s32.totalorder %s54, %s56
      %p63 = scmp.eq.s32.totalorder %s25, 1
      %p64 = por %p62, %p63
      %p65 = scmp.ne.s32.totalorder %s56, %s57
      %p66 = scmp.eq.s32.totalorder %s25, 0
      %p67 = por %p65, %p66
      %p68 = scmp.ne.s32.totalorder %s56, %s57
      %p69 = scmp.eq.s32.totalorder %s26, 1
      %p70 = por %p68, %p69
      %p72 = scmp.ne.s32.totalorder %s57, %s71
      %p73 = scmp.eq.s32.totalorder %s26, 0
      %p74 = por %p72, %p73
      %s76 = sadd.s32 %s75, 1
      %p79 = scmp.eq.s32.totalorder %s20, 1
      %p80 = scmp.ne.s32.totalorder %s75, %s77
      %p81 = scmp.eq.s32.totalorder %s20, 0
      %p82 = por %p80, %p81
      %p83 = scmp.ne.s32.totalorder %s75, %s77
      %p84 = scmp.eq.s32.totalorder %s25, 1
      %p85 = por %p83, %p84
      %p86 = scmp.ne.s32.totalorder %s77, %s78
      %p87 = scmp.eq.s32.totalorder %s25, 0
      %p88 = por %p86, %p87
      %p89 = scmp.ne.s32.totalorder %s77, %s78
      %p90 = scmp.eq.s32.totalorder %s26, 1
      %p91 = por %p89, %p90
      %p93 = scmp.ne.s32.totalorder %s78, %s92
      %p94 = scmp.eq.s32.totalorder %s26, 0
      %p95 = por %p93, %p94
      %s97 = sadd.s32 %s96, 1
      %p100 = scmp.eq.s32.totalorder %s20, 1
      %p101 = scmp.ne.s32.totalorder %s96, %s98
      %p102 = scmp.eq.s32.totalorder %s20, 0
      %p103 = por %p101, %p102
      %p104 = scmp.ne.s32.totalorder %s96, %s98
      %p105 = scmp.eq.s32.totalorder %s25, 1
      %p106 = por %p104, %p105
      %p107 = scmp.ne.s32.totalorder %s98, %s99
      %p108 = scmp.eq.s32.totalorder %s25, 0
      %p109 = por %p107, %p108
      %p110 = scmp.ne.s32.totalorder %s98, %s99
      %p111 = scmp.eq.s32.totalorder %s26, 1
      %p112 = por %p110, %p111
      %p114 = scmp.ne.s32.totalorder %s99, %s113
      %p115 = scmp.eq.s32.totalorder %s26, 0
      %p116 = por %p114, %p115
      %s118 = sadd.s32 %s117, 1
      %p121 = scmp.eq.s32.totalorder %s20, 1
      %p122 = scmp.ne.s32.totalorder %s117, %s119
      %p123 = scmp.eq.s32.totalorder %s20, 0
      %p124 = por %p122, %p123
      %p125 = scmp.ne.s32.totalorder %s117, %s119
      %p126 = scmp.eq.s32.totalorder %s25, 1
      %p127 = por %p125, %p126
      %p128 = scmp.ne.s32.totalorder %s119, %s120
      %p129 = scmp.eq.s32.totalorder %s25, 0
      %p130 = por %p128, %p129
      %p131 = scmp.ne.s32.totalorder %s119, %s120
      %p132 = scmp.eq.s32.totalorder %s26, 1
      %p133 = por %p131, %p132
      %p135 = scmp.ne.s32.totalorder %s120, %s134
      %p136 = scmp.eq.s32.totalorder %s26, 0
      %p137 = por %p135, %p136
      %s139 = sadd.s32 %s138, 1
      %p142 = scmp.eq.s32.totalorder %s20, 1
      %p143 = scmp.ne.s32.totalorder %s138, %s140
      %p144 = scmp.eq.s32.totalorder %s20, 0
      %p145 = por %p143, %p144
      %p146 = scmp.ne.s32.totalorder %s138, %s140
      %p147 = scmp.eq.s32.totalorder %s25, 1
      %p148 = por %p146, %p147
      %p149 = scmp.ne.s32.totalorder %s140, %s141
      %p150 = scmp.eq.s32.totalorder %s25, 0
      %p151 = por %p149, %p150
      %p152 = scmp.ne.s32.totalorder %s140, %s141
      %p153 = scmp.eq.s32.totalorder %s26, 1
      %p154 = por %p152, %p153
      %p156 = scmp.ne.s32.totalorder %s141, %s155
      %p157 = scmp.eq.s32.totalorder %s26, 0
      %p158 = por %p156, %p157
      %s160 = sadd.s32 %s159, 1
      %p163 = scmp.eq.s32.totalorder %s20, 1
      %p164 = scmp.ne.s32.totalorder %s159, %s161
      %p165 = scmp.eq.s32.totalorder %s20, 0
      %p166 = por %p164, %p165
      %p167 = scmp.ne.s32.totalorder %s159, %s161
      %p168 = scmp.eq.s32.totalorder %s25, 1
      %p169 = por %p167, %p168
      %p170 = scmp.ne.s32.totalorder %s161, %s162
      %p171 = scmp.eq.s32.totalorder %s25, 0
      %p172 = por %p170, %p171
      %p173 = scmp.ne.s32.totalorder %s161, %s162
      %p174 = scmp.eq.s32.totalorder %s26, 1
      %p175 = por %p173, %p174
      %p177 = scmp.ne.s32.totalorder %s162, %s176
      %p178 = scmp.eq.s32.totalorder %s26, 0
      %p179 = por %p177, %p178
      %s180 = ssub.s32 %s20, %s27
      %p181 = scmp.eq.s32.totalorder %s180, 0
      %s183 = sadd.s32 %s182, 1
      %s184 = scalar_select %p181, %s182, %s183
      %p187 = pneg %p181
      %p188 = scmp.eq.s32.totalorder %s20, 1
      %p189 = por %p187, %p188
      %p190 = scmp.ne.s32.totalorder %s182, %s185
      %p191 = scmp.eq.s32.totalorder %s20, 0
      %p192 = por %p190, %p191
      %p193 = scmp.ne.s32.totalorder %s182, %s185
      %p194 = scmp.eq.s32.totalorder %s25, 1
      %p195 = por %p193, %p194
      %p196 = scmp.ne.s32.totalorder %s185, %s186
      %p197 = scmp.eq.s32.totalorder %s25, 0
      %p198 = por %p196, %p197
      %p199 = scmp.ne.s32.totalorder %s185, %s186
      %p200 = scmp.eq.s32.totalorder %s26, 1
      %p201 = por %p199, %p200
      %p203 = scmp.ne.s32.totalorder %s186, %s202
      %p204 = scmp.eq.s32.totalorder %s26, 0
      %p205 = por %p203, %p204
      %p206 = scmp.le.s32.totalorder 1, %s20
      %p207 = scmp.lt.s32.totalorder %s20, 3
      %p208 = pnand %p206, %p207
      %p209 = pneg %p208
      // Predicated region
      $region9: #{tpu_custom_call.1} parent=5 // pred_check
        _
      $region10: #{tpu_custom_call.1} parent=5 // pred_check_branch
        %211 = sbr.rel (%p208) target = $region12
      $region11: #{tpu_custom_call.1} parent=5 // pred_region
        %s212 = ssub.s32 %s20, 1
        // Predicated region
        $region13: #{tpu_custom_call.1} parent=11 // pred_check
          %p213 = pneg %p67
        $region14: #{tpu_custom_call.1} parent=11 // pred_check_branch
          %215 = sbr.rel (%p213) target = $region16
        $region15: #{tpu_custom_call.1} parent=11 // pred_region
          %s217 = ssub.s32 12288, 12288
          %218 = vsyncadd [#allocation7], %s217
          %s219 = sshll.u32 [#allocation6], 4
          %s220 = int_to_ptr.vmem [resolvable:$true] %s219
          %225 = dma.hbm_to_vmem [thread:$0]  %s1, 12288, %s220, [#allocation7], 128, 128, 8
        $region16: #{tpu_custom_call.1} parent=11 // pred_fallthru
          _
        // Predicated region
        $region17: #{tpu_custom_call.1} parent=11 // pred_check
          %p226 = pneg %p88
        $region18: #{tpu_custom_call.1} parent=11 // pred_check_branch
          %228 = sbr.rel (%p226) target = $region20
        $region19: #{tpu_custom_call.1} parent=11 // pred_region
          _
        $region20: #{tpu_custom_call.1} parent=11 // pred_fallthru
          _
        // Predicated region
        $region21: #{tpu_custom_call.1} parent=11 // pred_check
          %p229 = pneg %p109
        $region22: #{tpu_custom_call.1} parent=11 // pred_check_branch
          %231 = sbr.rel (%p229) target = $region24
        $region23: #{tpu_custom_call.1} parent=11 // pred_region
          _
        $region24: #{tpu_custom_call.1} parent=11 // pred_fallthru
          _
        // Predicated region
        $region25: #{tpu_custom_call.1} parent=11 // pred_check
          %p232 = pneg %p130
        $region26: #{tpu_custom_call.1} parent=11 // pred_check_branch
          %234 = sbr.rel (%p232) target = $region28
        $region27: #{tpu_custom_call.1} parent=11 // pred_region
          %s236 = ssub.s32 12288, 12288
          %237 = vsyncadd [#allocation7], %s236
          %s238 = sshll.u32 [#allocation8], 4
          %s239 = int_to_ptr.vmem [resolvable:$true] %s238
          %244 = dma.hbm_to_vmem [thread:$0]  %s4, 12288, %s239, [#allocation7], 128, 128, 8
        $region28: #{tpu_custom_call.1} parent=11 // pred_fallthru
          _
        // Predicated region
        $region29: #{tpu_custom_call.1} parent=11 // pred_check
          %p245 = pneg %p151
        $region30: #{tpu_custom_call.1} parent=11 // pred_check_branch
          %247 = sbr.rel (%p245) target = $region32
        $region31: #{tpu_custom_call.1} parent=11 // pred_region
          _
        $region32: #{tpu_custom_call.1} parent=11 // pred_fallthru
          _
        // Predicated region
        $region33: #{tpu_custom_call.1} parent=11 // pred_check
          %p248 = pneg %p172
        $region34: #{tpu_custom_call.1} parent=11 // pred_check_branch
          %250 = sbr.rel (%p248) target = $region36
        $region35: #{tpu_custom_call.1} parent=11 // pred_region
          _
        $region36: #{tpu_custom_call.1} parent=11 // pred_fallthru
          _
      $region12: #{tpu_custom_call.1} parent=5 // pred_fallthru
        _
      %p251 = scmp.lt.s32.totalorder %s20, 2
      // Predicated region
      $region37: #{tpu_custom_call.1} parent=5 // pred_check
        %p252 = pneg %p251
      $region38: #{tpu_custom_call.1} parent=5 // pred_check_branch
        %254 = sbr.rel (%p252) target = $region40
      $region39: #{tpu_custom_call.1} parent=5 // pred_region
        // Predicated region
        $region41: #{tpu_custom_call.1} parent=39 // pred_check
          %p255 = pneg %p40
        $region42: #{tpu_custom_call.1} parent=39 // pred_check_branch
          %257 = sbr.rel (%p255) target = $region44
        $region43: #{tpu_custom_call.1} parent=39 // pred_region
          %s258 = sand.u32 %s30, 1
          %s259 = scalar_lea.sflag [#allocation4], %s258
          %s260 = sand.u32 %s30, 1
          %s261 = smul.addr %s260, 32
          %s262 = scalar_lea.vmem [#allocation3], %s261
          %s264 = ssub.s32 512, 512
          %265 = vsyncadd %s259, %s264
          %s266 = smul.addr %s20, 4
          %s267 = smul.addr %s266, 128
          %s268 = scalar_lea.hbm %s0, %s267
          %s269 = sshll.u32 %s262, 4
          %s270 = int_to_ptr.vmem [resolvable:$true] %s269
          %275 = dma.hbm_to_vmem [thread:$0]  %s268, 512, %s270, %s259, 256, 256, 16
        $region44: #{tpu_custom_call.1} parent=39 // pred_fallthru
          _
      $region40: #{tpu_custom_call.1} parent=5 // pred_fallthru
        _
      %p276 = scmp.le.s32.totalorder 1, %s20
      %p277 = scmp.lt.s32.totalorder %s20, 3
      %p278 = pnand %p276, %p277
      %p279 = pneg %p278
      // Predicated region
      $region45: #{tpu_custom_call.1} parent=5 // pred_check
        _
      $region46: #{tpu_custom_call.1} parent=5 // pred_check_branch
        %281 = sbr.rel (%p278) target = $region48
      $region47: #{tpu_custom_call.1} parent=5 // pred_region
        %s282 = ssub.s32 %s20, 1
        %s283 = sand.u32 %s33, 1
        %s284 = scalar_lea.sflag [#allocation4], %s283
        %s285 = sand.u32 %s33, 1
        %s286 = smul.addr %s285, 32
        %s287 = scalar_lea.vmem [#allocation3], %s286
        // Predicated region
        $region49: #{tpu_custom_call.1} parent=47 // pred_check
          %p288 = pneg %p46
        $region50: #{tpu_custom_call.1} parent=47 // pred_check_branch
          %290 = sbr.rel (%p288) target = $region52
        $region51: #{tpu_custom_call.1} parent=47 // pred_region
          %291 = dma.done %s284, 512
        $region52: #{tpu_custom_call.1} parent=47 // pred_fallthru
          _
        // Predicated region
        $region53: #{tpu_custom_call.1} parent=47 // pred_check
          %p292 = pneg %p67
        $region54: #{tpu_custom_call.1} parent=47 // pred_check_branch
          %294 = sbr.rel (%p292) target = $region56
        $region55: #{tpu_custom_call.1} parent=47 // pred_region
          %295 = dma.done [#allocation7], 12288
        $region56: #{tpu_custom_call.1} parent=47 // pred_fallthru
          _
        // Predicated region
        $region57: #{tpu_custom_call.1} parent=47 // pred_check
          %p296 = pneg %p130
        $region58: #{tpu_custom_call.1} parent=47 // pred_check_branch
          %298 = sbr.rel (%p296) target = $region60
        $region59: #{tpu_custom_call.1} parent=47 // pred_region
          %299 = dma.done [#allocation7], 12288
        $region60: #{tpu_custom_call.1} parent=47 // pred_fallthru
          _
        %s300 = sand.u32 %s33, 1
        %s301 = scalar_lea.sflag [#allocation4], %s300
        %s302 = sand.u32 %s33, 1
        %s303 = smul.addr %s302, 32
        %s304 = scalar_lea.vmem [#allocation3], %s303
        %p305 = pneg %p46
        %p306 = pneg %p43
        %p307 = pneg %p67
        %p308 = pneg %p64
        %p309 = pneg %p88
        %p310 = pneg %p85
        %p311 = pneg %p109
        %p312 = pneg %p106
        %p313 = pneg %p130
        %p314 = pneg %p127
        %p315 = pneg %p151
        %p316 = pneg %p148
        %p317 = pneg %p172
        %p318 = pneg %p169
        %p319 = pneg %p198
        %p320 = pneg %p195
        %s321 = sand.u32 %s185, 1
        %s322 = scalar_lea.sflag [#allocation5], %s321
        %s323 = sand.u32 %s185, 1
        %s324 = smul.addr %s323, 32
        %s325 = scalar_lea.vmem [#allocation9], %s324
        %v326 = vlaneseq
        %vm327 = vcmp.ge.s32.totalorder %v326, 0
        %vm328 = vcmp.lt.s32.totalorder %v326, 256
        %vm329 = vmand %vm327, %vm328
        %330 = vst.msk [vmem:[#allocation2] ss:$8 sm:$0x3] %vm329, 0.0
        %331 = vst.msk [vmem:[#allocation2] ss:$8 sm:$0x0] %vm329, 0.0
        %s332 = scalar_lea.vmem [#allocation2], 33
        %333 = vst.msk [vmem:[%s332] ss:$8 sm:$0x3] %vm329, 0.0
        %334 = vst.msk [vmem:[%s332] ss:$8 sm:$0x0] %vm329, 0.0
        %v335 = vld [vmem:[%s287] sm:$0xff]
        %v336 = vld [vmem:[%s287 + $0x8] sm:$0xff]
        %v337 = vld [vmem:[%s287 + $0x10] sm:$0xff]
        %v338 = vld [vmem:[%s287 + $0x18] sm:$0xff]
        %vm343 = vcmask 1040384
        %v344 = vrot.slane %v335, 7
        %v345 = vrot.slane %v336, 7
        %v346 = vrot.slane %v337, 7
        %v347 = vsel %vm343, %v344, %v346
        %v348 = vrot.slane %v338, 7
        %v349 = vsel %vm343, %v345, %v348
        %356 = vst [vmem:[#allocation2] sm:$0xfe] %v344
        %357 = vst [vmem:[#allocation2 + $0x8] sm:$0xfe] %v345
        %358 = vst [vmem:[#allocation2 + $0x10] sm:$0xff] %v347
        %359 = vst [vmem:[#allocation2 + $0x18] sm:$0xff] %v349
        %360 = vst [vmem:[#allocation2 + $0x20] sm:$0x1] %v346
        %361 = vst [vmem:[#allocation2 + $0x28] sm:$0x1] %v348
        %v362 = vld [vmem:[#allocation2] sm:$0xff]
        %v363 = vld [vmem:[#allocation2 + $0x8] sm:$0xff]
        %v364 = vld [vmem:[#allocation2 + $0x10] sm:$0xff]
        %v365 = vld [vmem:[#allocation2 + $0x18] sm:$0xff]
        %v366 = vpack.c.bf16 %v364, %v362
        %v367 = vpack.c.bf16 %v365, %v363
        %v368 = vld [vmem:[#allocation6] sm:$0xff]
        %v369 = vld [vmem:[#allocation6 + $0x8] sm:$0xff]
        %v370 = vld [vmem:[#allocation6 + $0x10] sm:$0xff]
        %v371 = vld [vmem:[#allocation6 + $0x18] sm:$0xff]
        %v372 = vld [vmem:[#allocation6 + $0x20] sm:$0xff]
        %v373 = vld [vmem:[#allocation6 + $0x28] sm:$0xff]
        %v374 = vld [vmem:[#allocation6 + $0x30] sm:$0xff]
        %v375 = vld [vmem:[#allocation6 + $0x38] sm:$0xff]
        %v376 = vld [vmem:[#allocation6 + $0x40] sm:$0xff]
        %v377 = vld [vmem:[#allocation6 + $0x48] sm:$0xff]
        %v378 = vld [vmem:[#allocation6 + $0x50] sm:$0xff]
        %v379 = vld [vmem:[#allocation6 + $0x58] sm:$0xff]
        %v380 = vld [vmem:[#allocation6 + $0x60] sm:$0xff]
        %v381 = vld [vmem:[#allocation6 + $0x68] sm:$0xff]
        %v382 = vld [vmem:[#allocation6 + $0x70] sm:$0xff]
        %v383 = vld [vmem:[#allocation6 + $0x78] sm:$0xff]
        %v384 = vld [vmem:[#allocation6 + $0x80] sm:$0xff]
        %v385 = vld [vmem:[#allocation6 + $0x88] sm:$0xff]
        %v386 = vld [vmem:[#allocation6 + $0x90] sm:$0xff]
        %v387 = vld [vmem:[#allocation6 + $0x98] sm:$0xff]
        %v388 = vld [vmem:[#allocation6 + $0xa0] sm:$0xff]
        %v389 = vld [vmem:[#allocation6 + $0xa8] sm:$0xff]
        %v390 = vld [vmem:[#allocation6 + $0xb0] sm:$0xff]
        %v391 = vld [vmem:[#allocation6 + $0xb8] sm:$0xff]
        %v392 = vld [vmem:[#allocation6 + $0xc0] sm:$0xff]
        %v393 = vld [vmem:[#allocation6 + $0xc8] sm:$0xff]
        %v394 = vld [vmem:[#allocation6 + $0xd0] sm:$0xff]
        %v395 = vld [vmem:[#allocation6 + $0xd8] sm:$0xff]
        %v396 = vld [vmem:[#allocation6 + $0xe0] sm:$0xff]
        %v397 = vld [vmem:[#allocation6 + $0xe8] sm:$0xff]
        %v398 = vld [vmem:[#allocation6 + $0xf0] sm:$0xff]
        %v399 = vld [vmem:[#allocation6 + $0xf8] sm:$0xff]
        %v400 = vld [vmem:[#allocation2] sm:$0xfe]
        %v401 = vld [vmem:[#allocation2 + $0x8] sm:$0xfe]
        %v402 = vld [vmem:[#allocation2 + $0x20] sm:$0x1]
        %v403 = vld [vmem:[#allocation2 + $0x28] sm:$0x1]
        %v404 = vpack.c.bf16 %v364, %v400
        %v405 = vpack.c.bf16 %v365, %v401
        %v406 = vpack.c.bf16 %v402, %v402
        %v407 = vpack.c.bf16 %v403, %v403
        %s408 = scalar_lea.vmem [#allocation6], 256
        %v409 = vld [vmem:[%s408] sm:$0xff]
        %v410 = vld [vmem:[%s408 + $0x8] sm:$0xff]
        %v411 = vld [vmem:[%s408 + $0x10] sm:$0xff]
        %v412 = vld [vmem:[%s408 + $0x18] sm:$0xff]
        %v413 = vld [vmem:[%s408 + $0x20] sm:$0xff]
        %v414 = vld [vmem:[%s408 + $0x28] sm:$0xff]
        %v415 = vld [vmem:[%s408 + $0x30] sm:$0xff]
        %v416 = vld [vmem:[%s408 + $0x38] sm:$0xff]
        %v417 = vld [vmem:[%s408 + $0x40] sm:$0xff]
        %v418 = vld [vmem:[%s408 + $0x48] sm:$0xff]
        %v419 = vld [vmem:[%s408 + $0x50] sm:$0xff]
        %v420 = vld [vmem:[%s408 + $0x58] sm:$0xff]
        %v421 = vld [vmem:[%s408 + $0x60] sm:$0xff]
        %v422 = vld [vmem:[%s408 + $0x68] sm:$0xff]
        %v423 = vld [vmem:[%s408 + $0x70] sm:$0xff]
        %v424 = vld [vmem:[%s408 + $0x78] sm:$0xff]
        %v425 = vld [vmem:[%s408 + $0x80] sm:$0xff]
        %v426 = vld [vmem:[%s408 + $0x88] sm:$0xff]
        %v427 = vld [vmem:[%s408 + $0x90] sm:$0xff]
        %v428 = vld [vmem:[%s408 + $0x98] sm:$0xff]
        %v429 = vld [vmem:[%s408 + $0xa0] sm:$0xff]
        %v430 = vld [vmem:[%s408 + $0xa8] sm:$0xff]
        %v431 = vld [vmem:[%s408 + $0xb0] sm:$0xff]
        %v432 = vld [vmem:[%s408 + $0xb8] sm:$0xff]
        %v433 = vld [vmem:[%s408 + $0xc0] sm:$0xff]
        %v434 = vld [vmem:[%s408 + $0xc8] sm:$0xff]
        %v435 = vld [vmem:[%s408 + $0xd0] sm:$0xff]
        %v436 = vld [vmem:[%s408 + $0xd8] sm:$0xff]
        %v437 = vld [vmem:[%s408 + $0xe0] sm:$0xff]
        %v438 = vld [vmem:[%s408 + $0xe8] sm:$0xff]
        %v439 = vld [vmem:[%s408 + $0xf0] sm:$0xff]
        %v440 = vld [vmem:[%s408 + $0xf8] sm:$0xff]
        %vm441 = vsmask.f32 7424
        %v443 = vshrl.u32 %v404, 16
        %v445 = vshll.u32 %v404, 16
        %v447 = vrot.slane %v445, 1
        %v448 = vor.u32 %v443, %v447
        %v450 = vshll.u32 %v406, 16
        %v452 = vrot.slane %v450, 1
        %v453 = vsel %vm441, %v448, %v452
        %v455 = vshrl.u32 %v405, 16
        %v457 = vshll.u32 %v405, 16
        %v459 = vrot.slane %v457, 1
        %v460 = vor.u32 %v455, %v459
        %v462 = vshll.u32 %v407, 16
        %v464 = vrot.slane %v462, 1
        %v465 = vsel %vm441, %v460, %v464
        %v500 = vunpack.c.l.b16 %v409
        %v501 = vunpack.c.h.b16 %v409
        %v502 = vunpack.c.l.b16 %v410
        %v503 = vunpack.c.h.b16 %v410
        %v504 = vunpack.c.l.b16 %v411
        %v505 = vunpack.c.h.b16 %v411
        %v506 = vunpack.c.l.b16 %v412
        %v507 = vunpack.c.h.b16 %v412
        %v508 = vunpack.c.l.b16 %v413
        %v509 = vunpack.c.h.b16 %v413
        %v510 = vunpack.c.l.b16 %v414
        %v511 = vunpack.c.h.b16 %v414
        %v512 = vunpack.c.l.b16 %v415
        %v513 = vunpack.c.h.b16 %v415
        %v514 = vunpack.c.l.b16 %v416
        %v515 = vunpack.c.h.b16 %v416
        %v516 = vunpack.c.l.b16 %v417
        %v517 = vunpack.c.h.b16 %v417
        %v518 = vunpack.c.l.b16 %v418
        %v519 = vunpack.c.h.b16 %v418
        %v520 = vunpack.c.l.b16 %v419
        %v521 = vunpack.c.h.b16 %v419
        %v522 = vunpack.c.l.b16 %v420
        %v523 = vunpack.c.h.b16 %v420
        %v524 = vunpack.c.l.b16 %v421
        %v525 = vunpack.c.h.b16 %v421
        %v526 = vunpack.c.l.b16 %v422
        %v527 = vunpack.c.h.b16 %v422
        %v528 = vunpack.c.l.b16 %v423
        %v529 = vunpack.c.h.b16 %v423
        %v530 = vunpack.c.l.b16 %v424
        %v531 = vunpack.c.h.b16 %v424
        %v532 = vunpack.c.l.b16 %v425
        %v533 = vunpack.c.h.b16 %v425
        %v534 = vunpack.c.l.b16 %v426
        %v535 = vunpack.c.h.b16 %v426
        %v536 = vunpack.c.l.b16 %v427
        %v537 = vunpack.c.h.b16 %v427
        %v538 = vunpack.c.l.b16 %v428
        %v539 = vunpack.c.h.b16 %v428
        %v540 = vunpack.c.l.b16 %v429
        %v541 = vunpack.c.h.b16 %v429
        %v542 = vunpack.c.l.b16 %v430
        %v543 = vunpack.c.h.b16 %v430
        %v544 = vunpack.c.l.b16 %v431
        %v545 = vunpack.c.h.b16 %v431
        %v546 = vunpack.c.l.b16 %v432
        %v547 = vunpack.c.h.b16 %v432
        %v548 = vunpack.c.l.b16 %v433
        %v549 = vunpack.c.h.b16 %v433
        %v550 = vunpack.c.l.b16 %v434
        %v551 = vunpack.c.h.b16 %v434
        %v552 = vunpack.c.l.b16 %v435
        %v553 = vunpack.c.h.b16 %v435
        %v554 = vunpack.c.l.b16 %v436
        %v555 = vunpack.c.h.b16 %v436
        %v556 = vunpack.c.l.b16 %v437
        %v557 = vunpack.c.h.b16 %v437
        %v558 = vunpack.c.l.b16 %v438
        %v559 = vunpack.c.h.b16 %v438
        %v560 = vunpack.c.l.b16 %v439
        %v561 = vunpack.c.h.b16 %v439
        %v562 = vunpack.c.l.b16 %v440
        %v563 = vunpack.c.h.b16 %v440
        %v564 = vpack.c.b16 %v502, %v500
        %v565 = vpack.c.b16 %v503, %v501
        %v566 = vpack.c.b16 %v506, %v504
        %v567 = vpack.c.b16 %v507, %v505
        %v568 = vpack.c.b16 %v510, %v508
        %v569 = vpack.c.b16 %v511, %v509
        %v570 = vpack.c.b16 %v514, %v512
        %v571 = vpack.c.b16 %v515, %v513
        %v572 = vpack.c.b16 %v518, %v516
        %v573 = vpack.c.b16 %v519, %v517
        %v574 = vpack.c.b16 %v522, %v520
        %v575 = vpack.c.b16 %v523, %v521
        %v576 = vpack.c.b16 %v526, %v524
        %v577 = vpack.c.b16 %v527, %v525
        %v578 = vpack.c.b16 %v530, %v528
        %v579 = vpack.c.b16 %v531, %v529
        %v580 = vpack.c.b16 %v534, %v532
        %v581 = vpack.c.b16 %v535, %v533
        %v582 = vpack.c.b16 %v538, %v536
        %v583 = vpack.c.b16 %v539, %v537
        %v584 = vpack.c.b16 %v542, %v540
        %v585 = vpack.c.b16 %v543, %v541
        %v586 = vpack.c.b16 %v546, %v544
        %v587 = vpack.c.b16 %v547, %v545
        %v588 = vpack.c.b16 %v550, %v548
        %v589 = vpack.c.b16 %v551, %v549
        %v590 = vpack.c.b16 %v554, %v552
        %v591 = vpack.c.b16 %v555, %v553
        %v592 = vpack.c.b16 %v558, %v556
        %v593 = vpack.c.b16 %v559, %v557
        %v594 = vpack.c.b16 %v562, %v560
        %v595 = vpack.c.b16 %v563, %v561
        %628 = vmatprep.subr.bf16.mxu0 %v565
        %629 = vmatpush1.bf16.msra.mxu0 %v564
        %630 = vmatprep.subr.bf16.mxu0 %v567
        %631 = vmatpush1.bf16.msra.mxu0 %v566
        %632 = vmatprep.subr.bf16.mxu0 %v569
        %633 = vmatpush1.bf16.msra.mxu0 %v568
        %634 = vmatprep.subr.bf16.mxu0 %v571
        %635 = vmatpush1.bf16.msra.mxu0 %v570
        %636 = vmatprep.subr.bf16.mxu0 %v573
        %637 = vmatpush1.bf16.msra.mxu0 %v572
        %638 = vmatprep.subr.bf16.mxu0 %v575
        %639 = vmatpush1.bf16.msra.mxu0 %v574
        %640 = vmatprep.subr.bf16.mxu0 %v577
        %641 = vmatpush1.bf16.msra.mxu0 %v576
        %642 = vmatprep.subr.bf16.mxu0 %v579
        %643 = vmatpush1.bf16.msra.mxu0 %v578
        %644 = vmatprep.subr.bf16.mxu0 %v581
        %645 = vmatpush1.bf16.msra.mxu0 %v580
        %646 = vmatprep.subr.bf16.mxu0 %v583
        %647 = vmatpush1.bf16.msra.mxu0 %v582
        %648 = vmatprep.subr.bf16.mxu0 %v585
        %649 = vmatpush1.bf16.msra.mxu0 %v584
        %650 = vmatprep.subr.bf16.mxu0 %v587
        %651 = vmatpush1.bf16.msra.mxu0 %v586
        %652 = vmatprep.subr.bf16.mxu0 %v589
        %653 = vmatpush1.bf16.msra.mxu0 %v588
        %654 = vmatprep.subr.bf16.mxu0 %v591
        %655 = vmatpush1.bf16.msra.mxu0 %v590
        %656 = vmatprep.subr.bf16.mxu0 %v593
        %657 = vmatpush1.bf16.msra.mxu0 %v592
        %658 = vmatprep.subr.bf16.mxu0 %v595
        %659 = vmatpush1.bf16.msra.mxu0 %v594
        %660 = vmatprep.mubr.bf16.mxu0 %v465
        %661 = vmatmul.mubr.bf16.gmra.mrb[0].mxu0 %v453
        %v662 = vpop.f32.mrb[0].mxu0
        %v663 = vadd.f32 0.0, %v662
        %v664 = vpop.f32.mrb[0].mxu0
        %v665 = vadd.f32 0.0, %v664
        %v666 = vpop.f32.mrb[0].mxu0
        %v667 = vadd.f32 0.0, %v666
        %v668 = vpop.f32.mrb[0].mxu0
        %v669 = vadd.f32 0.0, %v668
        %670 = vdwg.mxu0
        %v703 = vunpack.c.l.b16 %v368
        %v704 = vunpack.c.h.b16 %v368
        %v705 = vunpack.c.l.b16 %v369
        %v706 = vunpack.c.h.b16 %v369
        %v707 = vunpack.c.l.b16 %v370
        %v708 = vunpack.c.h.b16 %v370
        %v709 = vunpack.c.l.b16 %v371
        %v710 = vunpack.c.h.b16 %v371
        %v711 = vunpack.c.l.b16 %v372
        %v712 = vunpack.c.h.b16 %v372
        %v713 = vunpack.c.l.b16 %v373
        %v714 = vunpack.c.h.b16 %v373
        %v715 = vunpack.c.l.b16 %v374
        %v716 = vunpack.c.h.b16 %v374
        %v717 = vunpack.c.l.b16 %v375
        %v718 = vunpack.c.h.b16 %v375
        %v719 = vunpack.c.l.b16 %v376
        %v720 = vunpack.c.h.b16 %v376
        %v721 = vunpack.c.l.b16 %v377
        %v722 = vunpack.c.h.b16 %v377
        %v723 = vunpack.c.l.b16 %v378
        %v724 = vunpack.c.h.b16 %v378
        %v725 = vunpack.c.l.b16 %v379
        %v726 = vunpack.c.h.b16 %v379
        %v727 = vunpack.c.l.b16 %v380
        %v728 = vunpack.c.h.b16 %v380
        %v729 = vunpack.c.l.b16 %v381
        %v730 = vunpack.c.h.b16 %v381
        %v731 = vunpack.c.l.b16 %v382
        %v732 = vunpack.c.h.b16 %v382
        %v733 = vunpack.c.l.b16 %v383
        %v734 = vunpack.c.h.b16 %v383
        %v735 = vunpack.c.l.b16 %v384
        %v736 = vunpack.c.h.b16 %v384
        %v737 = vunpack.c.l.b16 %v385
        %v738 = vunpack.c.h.b16 %v385
        %v739 = vunpack.c.l.b16 %v386
        %v740 = vunpack.c.h.b16 %v386
        %v741 = vunpack.c.l.b16 %v387
        %v742 = vunpack.c.h.b16 %v387
        %v743 = vunpack.c.l.b16 %v388
        %v744 = vunpack.c.h.b16 %v388
        %v745 = vunpack.c.l.b16 %v389
        %v746 = vunpack.c.h.b16 %v389
        %v747 = vunpack.c.l.b16 %v390
        %v748 = vunpack.c.h.b16 %v390
        %v749 = vunpack.c.l.b16 %v391
        %v750 = vunpack.c.h.b16 %v391
        %v751 = vunpack.c.l.b16 %v392
        %v752 = vunpack.c.h.b16 %v392
        %v753 = vunpack.c.l.b16 %v393
        %v754 = vunpack.c.h.b16 %v393
        %v755 = vunpack.c.l.b16 %v394
        %v756 = vunpack.c.h.b16 %v394
        %v757 = vunpack.c.l.b16 %v395
        %v758 = vunpack.c.h.b16 %v395
        %v759 = vunpack.c.l.b16 %v396
        %v760 = vunpack.c.h.b16 %v396
        %v761 = vunpack.c.l.b16 %v397
        %v762 = vunpack.c.h.b16 %v397
        %v763 = vunpack.c.l.b16 %v398
        %v764 = vunpack.c.h.b16 %v398
        %v765 = vunpack.c.l.b16 %v399
        %v766 = vunpack.c.h.b16 %v399
        %v767 = vpack.c.b16 %v705, %v703
        %v768 = vpack.c.b16 %v706, %v704
        %v769 = vpack.c.b16 %v709, %v707
        %v770 = vpack.c.b16 %v710, %v708
        %v771 = vpack.c.b16 %v713, %v711
        %v772 = vpack.c.b16 %v714, %v712
        %v773 = vpack.c.b16 %v717, %v715
        %v774 = vpack.c.b16 %v718, %v716
        %v775 = vpack.c.b16 %v721, %v719
        %v776 = vpack.c.b16 %v722, %v720
        %v777 = vpack.c.b16 %v725, %v723
        %v778 = vpack.c.b16 %v726, %v724
        %v779 = vpack.c.b16 %v729, %v727
        %v780 = vpack.c.b16 %v730, %v728
        %v781 = vpack.c.b16 %v733, %v731
        %v782 = vpack.c.b16 %v734, %v732
        %v783 = vpack.c.b16 %v737, %v735
        %v784 = vpack.c.b16 %v738, %v736
        %v785 = vpack.c.b16 %v741, %v739
        %v786 = vpack.c.b16 %v742, %v740
        %v787 = vpack.c.b16 %v745, %v743
        %v788 = vpack.c.b16 %v746, %v744
        %v789 = vpack.c.b16 %v749, %v747
        %v790 = vpack.c.b16 %v750, %v748
        %v791 = vpack.c.b16 %v753, %v751
        %v792 = vpack.c.b16 %v754, %v752
        %v793 = vpack.c.b16 %v757, %v755
        %v794 = vpack.c.b16 %v758, %v756
        %v795 = vpack.c.b16 %v761, %v759
        %v796 = vpack.c.b16 %v762, %v760
        %v797 = vpack.c.b16 %v765, %v763
        %v798 = vpack.c.b16 %v766, %v764
        %831 = vmatprep.subr.bf16.mxu0 %v768
        %832 = vmatpush1.bf16.msra.mxu0 %v767
        %833 = vmatprep.subr.bf16.mxu0 %v770
        %834 = vmatpush1.bf16.msra.mxu0 %v769
        %835 = vmatprep.subr.bf16.mxu0 %v772
        %836 = vmatpush1.bf16.msra.mxu0 %v771
        %837 = vmatprep.subr.bf16.mxu0 %v774
        %838 = vmatpush1.bf16.msra.mxu0 %v773
        %839 = vmatprep.subr.bf16.mxu0 %v776
        %840 = vmatpush1.bf16.msra.mxu0 %v775
        %841 = vmatprep.subr.bf16.mxu0 %v778
        %842 = vmatpush1.bf16.msra.mxu0 %v777
        %843 = vmatprep.subr.bf16.mxu0 %v780
        %844 = vmatpush1.bf16.msra.mxu0 %v779
        %845 = vmatprep.subr.bf16.mxu0 %v782
        %846 = vmatpush1.bf16.msra.mxu0 %v781
        %847 = vmatprep.subr.bf16.mxu0 %v784
        %848 = vmatpush1.bf16.msra.mxu0 %v783
        %849 = vmatprep.subr.bf16.mxu0 %v786
        %850 = vmatpush1.bf16.msra.mxu0 %v785
        %851 = vmatprep.subr.bf16.mxu0 %v788
        %852 = vmatpush1.bf16.msra.mxu0 %v787
        %853 = vmatprep.subr.bf16.mxu0 %v790
        %854 = vmatpush1.bf16.msra.mxu0 %v789
        %855 = vmatprep.subr.bf16.mxu0 %v792
        %856 = vmatpush1.bf16.msra.mxu0 %v791
        %857 = vmatprep.subr.bf16.mxu0 %v794
        %858 = vmatpush1.bf16.msra.mxu0 %v793
        %859 = vmatprep.subr.bf16.mxu0 %v796
        %860 = vmatpush1.bf16.msra.mxu0 %v795
        %861 = vmatprep.subr.bf16.mxu0 %v798
        %862 = vmatpush1.bf16.msra.mxu0 %v797
        %863 = vmatprep.mubr.bf16.mxu0 %v367
        %864 = vmatmul.mubr.bf16.gmra.mrb[0].mxu0 %v366
        %v865 = vpop.f32.mrb[0].mxu0
        %v866 = vadd.f32 %v663, %v865
        %v867 = vpop.f32.mrb[0].mxu0
        %v868 = vadd.f32 %v665, %v867
        %v869 = vpop.f32.mrb[0].mxu0
        %v870 = vadd.f32 %v667, %v869
        %v871 = vpop.f32.mrb[0].mxu0
        %v872 = vadd.f32 %v669, %v871
        %873 = vdwg.mxu0
        %v874 = vld [vmem:[#allocation2] sm:$0xfc]
        %v875 = vld [vmem:[#allocation2 + $0x8] sm:$0xfc]
        %v876 = vld [vmem:[#allocation2 + $0x20] sm:$0x3]
        %v877 = vld [vmem:[#allocation2 + $0x28] sm:$0x3]
        %v878 = vpack.c.bf16 %v364, %v874
        %v879 = vpack.c.bf16 %v365, %v875
        %v880 = vpack.c.bf16 %v876, %v876
        %v881 = vpack.c.bf16 %v877, %v877
        %s882 = scalar_lea.vmem [#allocation6], 512
        %v883 = vld [vmem:[%s882] sm:$0xff]
        %v884 = vld [vmem:[%s882 + $0x8] sm:$0xff]
        %v885 = vld [vmem:[%s882 + $0x10] sm:$0xff]
        %v886 = vld [vmem:[%s882 + $0x18] sm:$0xff]
        %v887 = vld [vmem:[%s882 + $0x20] sm:$0xff]
        %v888 = vld [vmem:[%s882 + $0x28] sm:$0xff]
        %v889 = vld [vmem:[%s882 + $0x30] sm:$0xff]
        %v890 = vld [vmem:[%s882 + $0x38] sm:$0xff]
        %v891 = vld [vmem:[%s882 + $0x40] sm:$0xff]
        %v892 = vld [vmem:[%s882 + $0x48] sm:$0xff]
        %v893 = vld [vmem:[%s882 + $0x50] sm:$0xff]
        %v894 = vld [vmem:[%s882 + $0x58] sm:$0xff]
        %v895 = vld [vmem:[%s882 + $0x60] sm:$0xff]
        %v896 = vld [vmem:[%s882 + $0x68] sm:$0xff]
        %v897 = vld [vmem:[%s882 + $0x70] sm:$0xff]
        %v898 = vld [vmem:[%s882 + $0x78] sm:$0xff]
        %v899 = vld [vmem:[%s882 + $0x80] sm:$0xff]
        %v900 = vld [vmem:[%s882 + $0x88] sm:$0xff]
        %v901 = vld [vmem:[%s882 + $0x90] sm:$0xff]
        %v902 = vld [vmem:[%s882 + $0x98] sm:$0xff]
        %v903 = vld [vmem:[%s882 + $0xa0] sm:$0xff]
        %v904 = vld [vmem:[%s882 + $0xa8] sm:$0xff]
        %v905 = vld [vmem:[%s882 + $0xb0] sm:$0xff]
        %v906 = vld [vmem:[%s882 + $0xb8] sm:$0xff]
        %v907 = vld [vmem:[%s882 + $0xc0] sm:$0xff]
        %v908 = vld [vmem:[%s882 + $0xc8] sm:$0xff]
        %v909 = vld [vmem:[%s882 + $0xd0] sm:$0xff]
        %v910 = vld [vmem:[%s882 + $0xd8] sm:$0xff]
        %v911 = vld [vmem:[%s882 + $0xe0] sm:$0xff]
        %v912 = vld [vmem:[%s882 + $0xe8] sm:$0xff]
        %v913 = vld [vmem:[%s882 + $0xf0] sm:$0xff]
        %v914 = vld [vmem:[%s882 + $0xf8] sm:$0xff]
        %vm919 = vcmask 1046528
        %v920 = vrot.slane %v878, 1
        %v921 = vrot.slane %v880, 1
        %v922 = vsel %vm919, %v920, %v921
        %v923 = vrot.slane %v879, 1
        %v924 = vrot.slane %v881, 1
        %v925 = vsel %vm919, %v923, %v924
        %v960 = vunpack.c.l.b16 %v883
        %v961 = vunpack.c.h.b16 %v883
        %v962 = vunpack.c.l.b16 %v884
        %v963 = vunpack.c.h.b16 %v884
        %v964 = vunpack.c.l.b16 %v885
        %v965 = vunpack.c.h.b16 %v885
        %v966 = vunpack.c.l.b16 %v886
        %v967 = vunpack.c.h.b16 %v886
        %v968 = vunpack.c.l.b16 %v887
        %v969 = vunpack.c.h.b16 %v887
        %v970 = vunpack.c.l.b16 %v888
        %v971 = vunpack.c.h.b16 %v888
        %v972 = vunpack.c.l.b16 %v889
        %v973 = vunpack.c.h.b16 %v889
        %v974 = vunpack.c.l.b16 %v890
        %v975 = vunpack.c.h.b16 %v890
        %v976 = vunpack.c.l.b16 %v891
        %v977 = vunpack.c.h.b16 %v891
        %v978 = vunpack.c.l.b16 %v892
        %v979 = vunpack.c.h.b16 %v892
        %v980 = vunpack.c.l.b16 %v893
        %v981 = vunpack.c.h.b16 %v893
        %v982 = vunpack.c.l.b16 %v894
        %v983 = vunpack.c.h.b16 %v894
        %v984 = vunpack.c.l.b16 %v895
        %v985 = vunpack.c.h.b16 %v895
        %v986 = vunpack.c.l.b16 %v896
        %v987 = vunpack.c.h.b16 %v896
        %v988 = vunpack.c.l.b16 %v897
        %v989 = vunpack.c.h.b16 %v897
        %v990 = vunpack.c.l.b16 %v898
        %v991 = vunpack.c.h.b16 %v898
        %v992 = vunpack.c.l.b16 %v899
        %v993 = vunpack.c.h.b16 %v899
        %v994 = vunpack.c.l.b16 %v900
        %v995 = vunpack.c.h.b16 %v900
        %v996 = vunpack.c.l.b16 %v901
        %v997 = vunpack.c.h.b16 %v901
        %v998 = vunpack.c.l.b16 %v902
        %v999 = vunpack.c.h.b16 %v902
        %v1000 = vunpack.c.l.b16 %v903
        %v1001 = vunpack.c.h.b16 %v903
        %v1002 = vunpack.c.l.b16 %v904
        %v1003 = vunpack.c.h.b16 %v904
        %v1004 = vunpack.c.l.b16 %v905
        %v1005 = vunpack.c.h.b16 %v905
        %v1006 = vunpack.c.l.b16 %v906
        %v1007 = vunpack.c.h.b16 %v906
        %v1008 = vunpack.c.l.b16 %v907
        %v1009 = vunpack.c.h.b16 %v907
        %v1010 = vunpack.c.l.b16 %v908
        %v1011 = vunpack.c.h.b16 %v908
        %v1012 = vunpack.c.l.b16 %v909
        %v1013 = vunpack.c.h.b16 %v909
        %v1014 = vunpack.c.l.b16 %v910
        %v1015 = vunpack.c.h.b16 %v910
        %v1016 = vunpack.c.l.b16 %v911
        %v1017 = vunpack.c.h.b16 %v911
        %v1018 = vunpack.c.l.b16 %v912
        %v1019 = vunpack.c.h.b16 %v912
        %v1020 = vunpack.c.l.b16 %v913
        %v1021 = vunpack.c.h.b16 %v913
        %v1022 = vunpack.c.l.b16 %v914
        %v1023 = vunpack.c.h.b16 %v914
        %v1024 = vpack.c.b16 %v962, %v960
        %v1025 = vpack.c.b16 %v963, %v961
        %v1026 = vpack.c.b16 %v966, %v964
        %v1027 = vpack.c.b16 %v967, %v965
        %v1028 = vpack.c.b16 %v970, %v968
        %v1029 = vpack.c.b16 %v971, %v969
        %v1030 = vpack.c.b16 %v974, %v972
        %v1031 = vpack.c.b16 %v975, %v973
        %v1032 = vpack.c.b16 %v978, %v976
        %v1033 = vpack.c.b16 %v979, %v977
        %v1034 = vpack.c.b16 %v982, %v980
        %v1035 = vpack.c.b16 %v983, %v981
        %v1036 = vpack.c.b16 %v986, %v984
        %v1037 = vpack.c.b16 %v987, %v985
        %v1038 = vpack.c.b16 %v990, %v988
        %v1039 = vpack.c.b16 %v991, %v989
        %v1040 = vpack.c.b16 %v994, %v992
        %v1041 = vpack.c.b16 %v995, %v993
        %v1042 = vpack.c.b16 %v998, %v996
        %v1043 = vpack.c.b16 %v999, %v997
        %v1044 = vpack.c.b16 %v1002, %v1000
        %v1045 = vpack.c.b16 %v1003, %v1001
        %v1046 = vpack.c.b16 %v1006, %v1004
        %v1047 = vpack.c.b16 %v1007, %v1005
        %v1048 = vpack.c.b16 %v1010, %v1008
        %v1049 = vpack.c.b16 %v1011, %v1009
        %v1050 = vpack.c.b16 %v1014, %v1012
        %v1051 = vpack.c.b16 %v1015, %v1013
        %v1052 = vpack.c.b16 %v1018, %v1016
        %v1053 = vpack.c.b16 %v1019, %v1017
        %v1054 = vpack.c.b16 %v1022, %v1020
        %v1055 = vpack.c.b16 %v1023, %v1021
        %1088 = vmatprep.subr.bf16.mxu0 %v1025
        %1089 = vmatpush1.bf16.msra.mxu0 %v1024
        %1090 = vmatprep.subr.bf16.mxu0 %v1027
        %1091 = vmatpush1.bf16.msra.mxu0 %v1026
        %1092 = vmatprep.subr.bf16.mxu0 %v1029
        %1093 = vmatpush1.bf16.msra.mxu0 %v1028
        %1094 = vmatprep.subr.bf16.mxu0 %v1031
        %1095 = vmatpush1.bf16.msra.mxu0 %v1030
        %1096 = vmatprep.subr.bf16.mxu0 %v1033
        %1097 = vmatpush1.bf16.msra.mxu0 %v1032
        %1098 = vmatprep.subr.bf16.mxu0 %v1035
        %1099 = vmatpush1.bf16.msra.mxu0 %v1034
        %1100 = vmatprep.subr.bf16.mxu0 %v1037
        %1101 = vmatpush1.bf16.msra.mxu0 %v1036
        %1102 = vmatprep.subr.bf16.mxu0 %v1039
        %1103 = vmatpush1.bf16.msra.mxu0 %v1038
        %1104 = vmatprep.subr.bf16.mxu0 %v1041
        %1105 = vmatpush1.bf16.msra.mxu0 %v1040
        %1106 = vmatprep.subr.bf16.mxu0 %v1043
        %1107 = vmatpush1.bf16.msra.mxu0 %v1042
        %1108 = vmatprep.subr.bf16.mxu0 %v1045
        %1109 = vmatpush1.bf16.msra.mxu0 %v1044
        %1110 = vmatprep.subr.bf16.mxu0 %v1047
        %1111 = vmatpush1.bf16.msra.mxu0 %v1046
        %1112 = vmatprep.subr.bf16.mxu0 %v1049
        %1113 = vmatpush1.bf16.msra.mxu0 %v1048
        %1114 = vmatprep.subr.bf16.mxu0 %v1051
        %1115 = vmatpush1.bf16.msra.mxu0 %v1050
        %1116 = vmatprep.subr.bf16.mxu0 %v1053
        %1117 = vmatpush1.bf16.msra.mxu0 %v1052
        %1118 = vmatprep.subr.bf16.mxu0 %v1055
        %1119 = vmatpush1.bf16.msra.mxu0 %v1054
        %1120 = vmatprep.mubr.bf16.mxu0 %v925
        %1121 = vmatmul.mubr.bf16.gmra.mrb[0].mxu0 %v922
        %v1122 = vpop.f32.mrb[0].mxu0
        %v1123 = vadd.f32 0.0, %v1122
        %v1124 = vpop.f32.mrb[0].mxu0
        %v1125 = vadd.f32 0.0, %v1124
        %v1126 = vpop.f32.mrb[0].mxu0
        %v1127 = vadd.f32 0.0, %v1126
        %v1128 = vpop.f32.mrb[0].mxu0
        %v1129 = vadd.f32 0.0, %v1128
        %1130 = vdwg.mxu0
        %v1131 = vadd.f32 %v866, %v1123
        %v1132 = vadd.f32 %v868, %v1125
        %v1133 = vadd.f32 %v870, %v1127
        %v1134 = vadd.f32 %v872, %v1129
        %v1135 = vld [vmem:[%s2] sm:$0x3]
        %v1137 = vlaneseq
        %v1138 = vshrl.u32 %v1137, 7
        %v1139 = vsub.s32 0, %v1138
        %v1140 = vrot.slane %v1135, %v1139
        %v1141 = vlaneseq
        %v1142 = vshrl.u32 %v1141, 7
        %v1143 = vsub.s32 1, %v1142
        %v1144 = vrot.slane %v1135, %v1143
        %v1147 = vmul.f32 %v1131, %v1140
        %v1148 = vmul.f32 %v1132, %v1144
        %v1149 = vmul.f32 %v1133, %v1140
        %v1150 = vmul.f32 %v1134, %v1144
        %v1151 = vld [vmem:[%s3] sm:$0x3]
        %v1153 = vlaneseq
        %v1154 = vshrl.u32 %v1153, 7
        %v1155 = vsub.s32 0, %v1154
        %v1156 = vrot.slane %v1151, %v1155
        %v1157 = vlaneseq
        %v1158 = vshrl.u32 %v1157, 7
        %v1159 = vsub.s32 1, %v1158
        %v1160 = vrot.slane %v1151, %v1159
        %v1163 = vadd.f32 %v1147, %v1156
        %v1164 = vadd.f32 %v1148, %v1160
        %v1165 = vadd.f32 %v1149, %v1156
        %v1166 = vadd.f32 %v1150, %v1160
        %v1167 = vadd.f32 %v1163, 0.0
        %v1168 = vadd.f32 %v1164, 0.0
        %v1169 = vadd.f32 %v1165, 0.0
        %v1170 = vadd.f32 %v1166, 0.0
        %v1171 = vadd.f32 %v1167, 0.0
        %v1172 = vadd.f32 %v1168, 0.0
        %v1173 = vadd.f32 %v1169, 0.0
        %v1174 = vadd.f32 %v1170, 0.0
        %vm1175 = vcmp.ge.f32.partialorder %v1171, 0.5
        %vm1176 = vcmp.ge.f32.partialorder %v1172, 0.5
        %vm1177 = vcmp.ge.f32.partialorder %v1173, 0.5
        %vm1178 = vcmp.ge.f32.partialorder %v1174, 0.5
        %v1179 = vsel %vm1175, 1, 0
        %v1180 = vsel %vm1176, 1, 0
        %v1181 = vsel %vm1177, 1, 0
        %v1182 = vsel %vm1178, 1, 0
        %v1183 = vcvt.s32.f32 %v1179
        %v1184 = vcvt.s32.f32 %v1180
        %v1185 = vcvt.s32.f32 %v1181
        %v1186 = vcvt.s32.f32 %v1182
        %v1191 = vrot.slane %v1183, 7
        %v1192 = vrot.slane %v1184, 7
        %v1193 = vrot.slane %v1185, 7
        %v1194 = vsel %vm343, %v1191, %v1193
        %v1195 = vrot.slane %v1186, 7
        %v1196 = vsel %vm343, %v1192, %v1195
        %1203 = vst [vmem:[#allocation2] sm:$0xfe] %v1191
        %1204 = vst [vmem:[#allocation2 + $0x8] sm:$0xfe] %v1192
        %1205 = vst [vmem:[#allocation2 + $0x10] sm:$0xff] %v1194
        %1206 = vst [vmem:[#allocation2 + $0x18] sm:$0xff] %v1196
        %1207 = vst [vmem:[#allocation2 + $0x20] sm:$0x1] %v1193
        %1208 = vst [vmem:[#allocation2 + $0x28] sm:$0x1] %v1195
        %v1209 = vld [vmem:[#allocation2] sm:$0xff]
        %v1210 = vld [vmem:[#allocation2 + $0x8] sm:$0xff]
        %v1211 = vld [vmem:[#allocation2 + $0x10] sm:$0xff]
        %v1212 = vld [vmem:[#allocation2 + $0x18] sm:$0xff]
        %v1213 = vpack.c.bf16 %v1211, %v1209
        %v1214 = vpack.c.bf16 %v1212, %v1210
        %v1215 = vld [vmem:[#allocation8] sm:$0xff]
        %v1216 = vld [vmem:[#allocation8 + $0x8] sm:$0xff]
        %v1217 = vld [vmem:[#allocation8 + $0x10] sm:$0xff]
        %v1218 = vld [vmem:[#allocation8 + $0x18] sm:$0xff]
        %v1219 = vld [vmem:[#allocation8 + $0x20] sm:$0xff]
        %v1220 = vld [vmem:[#allocation8 + $0x28] sm:$0xff]
        %v1221 = vld [vmem:[#allocation8 + $0x30] sm:$0xff]
        %v1222 = vld [vmem:[#allocation8 + $0x38] sm:$0xff]
        %v1223 = vld [vmem:[#allocation8 + $0x40] sm:$0xff]
        %v1224 = vld [vmem:[#allocation8 + $0x48] sm:$0xff]
        %v1225 = vld [vmem:[#allocation8 + $0x50] sm:$0xff]
        %v1226 = vld [vmem:[#allocation8 + $0x58] sm:$0xff]
        %v1227 = vld [vmem:[#allocation8 + $0x60] sm:$0xff]
        %v1228 = vld [vmem:[#allocation8 + $0x68] sm:$0xff]
        %v1229 = vld [vmem:[#allocation8 + $0x70] sm:$0xff]
        %v1230 = vld [vmem:[#allocation8 + $0x78] sm:$0xff]
        %v1231 = vld [vmem:[#allocation8 + $0x80] sm:$0xff]
        %v1232 = vld [vmem:[#allocation8 + $0x88] sm:$0xff]
        %v1233 = vld [vmem:[#allocation8 + $0x90] sm:$0xff]
        %v1234 = vld [vmem:[#allocation8 + $0x98] sm:$0xff]
        %v1235 = vld [vmem:[#allocation8 + $0xa0] sm:$0xff]
        %v1236 = vld [vmem:[#allocation8 + $0xa8] sm:$0xff]
        %v1237 = vld [vmem:[#allocation8 + $0xb0] sm:$0xff]
        %v1238 = vld [vmem:[#allocation8 + $0xb8] sm:$0xff]
        %v1239 = vld [vmem:[#allocation8 + $0xc0] sm:$0xff]
        %v1240 = vld [vmem:[#allocation8 + $0xc8] sm:$0xff]
        %v1241 = vld [vmem:[#allocation8 + $0xd0] sm:$0xff]
        %v1242 = vld [vmem:[#allocation8 + $0xd8] sm:$0xff]
        %v1243 = vld [vmem:[#allocation8 + $0xe0] sm:$0xff]
        %v1244 = vld [vmem:[#allocation8 + $0xe8] sm:$0xff]
        %v1245 = vld [vmem:[#allocation8 + $0xf0] sm:$0xff]
        %v1246 = vld [vmem:[#allocation8 + $0xf8] sm:$0xff]
        %v1247 = vld [vmem:[#allocation2] sm:$0xfe]
        %v1248 = vld [vmem:[#allocation2 + $0x8] sm:$0xfe]
        %v1249 = vld [vmem:[#allocation2 + $0x20] sm:$0x1]
        %v1250 = vld [vmem:[#allocation2 + $0x28] sm:$0x1]
        %v1251 = vpack.c.bf16 %v1211, %v1247
        %v1252 = vpack.c.bf16 %v1212, %v1248
        %v1253 = vpack.c.bf16 %v1249, %v1249
        %v1254 = vpack.c.bf16 %v1250, %v1250
        %s1255 = scalar_lea.vmem [#allocation8], 256
        %v1256 = vld [vmem:[%s1255] sm:$0xff]
        %v1257 = vld [vmem:[%s1255 + $0x8] sm:$0xff]
        %v1258 = vld [vmem:[%s1255 + $0x10] sm:$0xff]
        %v1259 = vld [vmem:[%s1255 + $0x18] sm:$0xff]
        %v1260 = vld [vmem:[%s1255 + $0x20] sm:$0xff]
        %v1261 = vld [vmem:[%s1255 + $0x28] sm:$0xff]
        %v1262 = vld [vmem:[%s1255 + $0x30] sm:$0xff]
        %v1263 = vld [vmem:[%s1255 + $0x38] sm:$0xff]
        %v1264 = vld [vmem:[%s1255 + $0x40] sm:$0xff]
        %v1265 = vld [vmem:[%s1255 + $0x48] sm:$0xff]
        %v1266 = vld [vmem:[%s1255 + $0x50] sm:$0xff]
        %v1267 = vld [vmem:[%s1255 + $0x58] sm:$0xff]
        %v1268 = vld [vmem:[%s1255 + $0x60] sm:$0xff]
        %v1269 = vld [vmem:[%s1255 + $0x68] sm:$0xff]
        %v1270 = vld [vmem:[%s1255 + $0x70] sm:$0xff]
        %v1271 = vld [vmem:[%s1255 + $0x78] sm:$0xff]
        %v1272 = vld [vmem:[%s1255 + $0x80] sm:$0xff]
        %v1273 = vld [vmem:[%s1255 + $0x88] sm:$0xff]
        %v1274 = vld [vmem:[%s1255 + $0x90] sm:$0xff]
        %v1275 = vld [vmem:[%s1255 + $0x98] sm:$0xff]
        %v1276 = vld [vmem:[%s1255 + $0xa0] sm:$0xff]
        %v1277 = vld [vmem:[%s1255 + $0xa8] sm:$0xff]
        %v1278 = vld [vmem:[%s1255 + $0xb0] sm:$0xff]
        %v1279 = vld [vmem:[%s1255 + $0xb8] sm:$0xff]
        %v1280 = vld [vmem:[%s1255 + $0xc0] sm:$0xff]
        %v1281 = vld [vmem:[%s1255 + $0xc8] sm:$0xff]
        %v1282 = vld [vmem:[%s1255 + $0xd0] sm:$0xff]
        %v1283 = vld [vmem:[%s1255 + $0xd8] sm:$0xff]
        %v1284 = vld [vmem:[%s1255 + $0xe0] sm:$0xff]
        %v1285 = vld [vmem:[%s1255 + $0xe8] sm:$0xff]
        %v1286 = vld [vmem:[%s1255 + $0xf0] sm:$0xff]
        %v1287 = vld [vmem:[%s1255 + $0xf8] sm:$0xff]
        %v1289 = vshrl.u32 %v1251, 16
        %v1291 = vshll.u32 %v1251, 16
        %v1293 = vrot.slane %v1291, 1
        %v1294 = vor.u32 %v1289, %v1293
        %v1296 = vshll.u32 %v1253, 16
        %v1298 = vrot.slane %v1296, 1
        %v1299 = vsel %vm441, %v1294, %v1298
        %v1301 = vshrl.u32 %v1252, 16
        %v1303 = vshll.u32 %v1252, 16
        %v1305 = vrot.slane %v1303, 1
        %v1306 = vor.u32 %v1301, %v1305
        %v1308 = vshll.u32 %v1254, 16
        %v1310 = vrot.slane %v1308, 1
        %v1311 = vsel %vm441, %v1306, %v1310
        %v1346 = vunpack.c.l.b16 %v1256
        %v1347 = vunpack.c.h.b16 %v1256
        %v1348 = vunpack.c.l.b16 %v1257
        %v1349 = vunpack.c.h.b16 %v1257
        %v1350 = vunpack.c.l.b16 %v1258
        %v1351 = vunpack.c.h.b16 %v1258
        %v1352 = vunpack.c.l.b16 %v1259
        %v1353 = vunpack.c.h.b16 %v1259
        %v1354 = vunpack.c.l.b16 %v1260
        %v1355 = vunpack.c.h.b16 %v1260
        %v1356 = vunpack.c.l.b16 %v1261
        %v1357 = vunpack.c.h.b16 %v1261
        %v1358 = vunpack.c.l.b16 %v1262
        %v1359 = vunpack.c.h.b16 %v1262
        %v1360 = vunpack.c.l.b16 %v1263
        %v1361 = vunpack.c.h.b16 %v1263
        %v1362 = vunpack.c.l.b16 %v1264
        %v1363 = vunpack.c.h.b16 %v1264
        %v1364 = vunpack.c.l.b16 %v1265
        %v1365 = vunpack.c.h.b16 %v1265
        %v1366 = vunpack.c.l.b16 %v1266
        %v1367 = vunpack.c.h.b16 %v1266
        %v1368 = vunpack.c.l.b16 %v1267
        %v1369 = vunpack.c.h.b16 %v1267
        %v1370 = vunpack.c.l.b16 %v1268
        %v1371 = vunpack.c.h.b16 %v1268
        %v1372 = vunpack.c.l.b16 %v1269
        %v1373 = vunpack.c.h.b16 %v1269
        %v1374 = vunpack.c.l.b16 %v1270
        %v1375 = vunpack.c.h.b16 %v1270
        %v1376 = vunpack.c.l.b16 %v1271
        %v1377 = vunpack.c.h.b16 %v1271
        %v1378 = vunpack.c.l.b16 %v1272
        %v1379 = vunpack.c.h.b16 %v1272
        %v1380 = vunpack.c.l.b16 %v1273
        %v1381 = vunpack.c.h.b16 %v1273
        %v1382 = vunpack.c.l.b16 %v1274
        %v1383 = vunpack.c.h.b16 %v1274
        %v1384 = vunpack.c.l.b16 %v1275
        %v1385 = vunpack.c.h.b16 %v1275
        %v1386 = vunpack.c.l.b16 %v1276
        %v1387 = vunpack.c.h.b16 %v1276
        %v1388 = vunpack.c.l.b16 %v1277
        %v1389 = vunpack.c.h.b16 %v1277
        %v1390 = vunpack.c.l.b16 %v1278
        %v1391 = vunpack.c.h.b16 %v1278
        %v1392 = vunpack.c.l.b16 %v1279
        %v1393 = vunpack.c.h.b16 %v1279
        %v1394 = vunpack.c.l.b16 %v1280
        %v1395 = vunpack.c.h.b16 %v1280
        %v1396 = vunpack.c.l.b16 %v1281
        %v1397 = vunpack.c.h.b16 %v1281
        %v1398 = vunpack.c.l.b16 %v1282
        %v1399 = vunpack.c.h.b16 %v1282
        %v1400 = vunpack.c.l.b16 %v1283
        %v1401 = vunpack.c.h.b16 %v1283
        %v1402 = vunpack.c.l.b16 %v1284
        %v1403 = vunpack.c.h.b16 %v1284
        %v1404 = vunpack.c.l.b16 %v1285
        %v1405 = vunpack.c.h.b16 %v1285
        %v1406 = vunpack.c.l.b16 %v1286
        %v1407 = vunpack.c.h.b16 %v1286
        %v1408 = vunpack.c.l.b16 %v1287
        %v1409 = vunpack.c.h.b16 %v1287
        %v1410 = vpack.c.b16 %v1348, %v1346
        %v1411 = vpack.c.b16 %v1349, %v1347
        %v1412 = vpack.c.b16 %v1352, %v1350
        %v1413 = vpack.c.b16 %v1353, %v1351
        %v1414 = vpack.c.b16 %v1356, %v1354
        %v1415 = vpack.c.b16 %v1357, %v1355
        %v1416 = vpack.c.b16 %v1360, %v1358
        %v1417 = vpack.c.b16 %v1361, %v1359
        %v1418 = vpack.c.b16 %v1364, %v1362
        %v1419 = vpack.c.b16 %v1365, %v1363
        %v1420 = vpack.c.b16 %v1368, %v1366
        %v1421 = vpack.c.b16 %v1369, %v1367
        %v1422 = vpack.c.b16 %v1372, %v1370
        %v1423 = vpack.c.b16 %v1373, %v1371
        %v1424 = vpack.c.b16 %v1376, %v1374
        %v1425 = vpack.c.b16 %v1377, %v1375
        %v1426 = vpack.c.b16 %v1380, %v1378
        %v1427 = vpack.c.b16 %v1381, %v1379
        %v1428 = vpack.c.b16 %v1384, %v1382
        %v1429 = vpack.c.b16 %v1385, %v1383
        %v1430 = vpack.c.b16 %v1388, %v1386
        %v1431 = vpack.c.b16 %v1389, %v1387
        %v1432 = vpack.c.b16 %v1392, %v1390
        %v1433 = vpack.c.b16 %v1393, %v1391
        %v1434 = vpack.c.b16 %v1396, %v1394
        %v1435 = vpack.c.b16 %v1397, %v1395
        %v1436 = vpack.c.b16 %v1400, %v1398
        %v1437 = vpack.c.b16 %v1401, %v1399
        %v1438 = vpack.c.b16 %v1404, %v1402
        %v1439 = vpack.c.b16 %v1405, %v1403
        %v1440 = vpack.c.b16 %v1408, %v1406
        %v1441 = vpack.c.b16 %v1409, %v1407
        %1474 = vmatprep.subr.bf16.mxu0 %v1411
        %1475 = vmatpush1.bf16.msra.mxu0 %v1410
        %1476 = vmatprep.subr.bf16.mxu0 %v1413
        %1477 = vmatpush1.bf16.msra.mxu0 %v1412
        %1478 = vmatprep.subr.bf16.mxu0 %v1415
        %1479 = vmatpush1.bf16.msra.mxu0 %v1414
        %1480 = vmatprep.subr.bf16.mxu0 %v1417
        %1481 = vmatpush1.bf16.msra.mxu0 %v1416
        %1482 = vmatprep.subr.bf16.mxu0 %v1419
        %1483 = vmatpush1.bf16.msra.mxu0 %v1418
        %1484 = vmatprep.subr.bf16.mxu0 %v1421
        %1485 = vmatpush1.bf16.msra.mxu0 %v1420
        %1486 = vmatprep.subr.bf16.mxu0 %v1423
        %1487 = vmatpush1.bf16.msra.mxu0 %v1422
        %1488 = vmatprep.subr.bf16.mxu0 %v1425
        %1489 = vmatpush1.bf16.msra.mxu0 %v1424
        %1490 = vmatprep.subr.bf16.mxu0 %v1427
        %1491 = vmatpush1.bf16.msra.mxu0 %v1426
        %1492 = vmatprep.subr.bf16.mxu0 %v1429
        %1493 = vmatpush1.bf16.msra.mxu0 %v1428
        %1494 = vmatprep.subr.bf16.mxu0 %v1431
        %1495 = vmatpush1.bf16.msra.mxu0 %v1430
        %1496 = vmatprep.subr.bf16.mxu0 %v1433
        %1497 = vmatpush1.bf16.msra.mxu0 %v1432
        %1498 = vmatprep.subr.bf16.mxu0 %v1435
        %1499 = vmatpush1.bf16.msra.mxu0 %v1434
        %1500 = vmatprep.subr.bf16.mxu0 %v1437
        %1501 = vmatpush1.bf16.msra.mxu0 %v1436
        %1502 = vmatprep.subr.bf16.mxu0 %v1439
        %1503 = vmatpush1.bf16.msra.mxu0 %v1438
        %1504 = vmatprep.subr.bf16.mxu0 %v1441
        %1505 = vmatpush1.bf16.msra.mxu0 %v1440
        %1506 = vmatprep.mubr.bf16.mxu0 %v1311
        %1507 = vmatmul.mubr.bf16.gmra.mrb[0].mxu0 %v1299
        %v1508 = vpop.f32.mrb[0].mxu0
        %v1509 = vadd.f32 0.0, %v1508
        %v1510 = vpop.f32.mrb[0].mxu0
        %v1511 = vadd.f32 0.0, %v1510
        %v1512 = vpop.f32.mrb[0].mxu0
        %v1513 = vadd.f32 0.0, %v1512
        %v1514 = vpop.f32.mrb[0].mxu0
        %v1515 = vadd.f32 0.0, %v1514
        %1516 = vdwg.mxu0
        %v1549 = vunpack.c.l.b16 %v1215
        %v1550 = vunpack.c.h.b16 %v1215
        %v1551 = vunpack.c.l.b16 %v1216
        %v1552 = vunpack.c.h.b16 %v1216
        %v1553 = vunpack.c.l.b16 %v1217
        %v1554 = vunpack.c.h.b16 %v1217
        %v1555 = vunpack.c.l.b16 %v1218
        %v1556 = vunpack.c.h.b16 %v1218
        %v1557 = vunpack.c.l.b16 %v1219
        %v1558 = vunpack.c.h.b16 %v1219
        %v1559 = vunpack.c.l.b16 %v1220
        %v1560 = vunpack.c.h.b16 %v1220
        %v1561 = vunpack.c.l.b16 %v1221
        %v1562 = vunpack.c.h.b16 %v1221
        %v1563 = vunpack.c.l.b16 %v1222
        %v1564 = vunpack.c.h.b16 %v1222
        %v1565 = vunpack.c.l.b16 %v1223
        %v1566 = vunpack.c.h.b16 %v1223
        %v1567 = vunpack.c.l.b16 %v1224
        %v1568 = vunpack.c.h.b16 %v1224
        %v1569 = vunpack.c.l.b16 %v1225
        %v1570 = vunpack.c.h.b16 %v1225
        %v1571 = vunpack.c.l.b16 %v1226
        %v1572 = vunpack.c.h.b16 %v1226
        %v1573 = vunpack.c.l.b16 %v1227
        %v1574 = vunpack.c.h.b16 %v1227
        %v1575 = vunpack.c.l.b16 %v1228
        %v1576 = vunpack.c.h.b16 %v1228
        %v1577 = vunpack.c.l.b16 %v1229
        %v1578 = vunpack.c.h.b16 %v1229
        %v1579 = vunpack.c.l.b16 %v1230
        %v1580 = vunpack.c.h.b16 %v1230
        %v1581 = vunpack.c.l.b16 %v1231
        %v1582 = vunpack.c.h.b16 %v1231
        %v1583 = vunpack.c.l.b16 %v1232
        %v1584 = vunpack.c.h.b16 %v1232
        %v1585 = vunpack.c.l.b16 %v1233
        %v1586 = vunpack.c.h.b16 %v1233
        %v1587 = vunpack.c.l.b16 %v1234
        %v1588 = vunpack.c.h.b16 %v1234
        %v1589 = vunpack.c.l.b16 %v1235
        %v1590 = vunpack.c.h.b16 %v1235
        %v1591 = vunpack.c.l.b16 %v1236
        %v1592 = vunpack.c.h.b16 %v1236
        %v1593 = vunpack.c.l.b16 %v1237
        %v1594 = vunpack.c.h.b16 %v1237
        %v1595 = vunpack.c.l.b16 %v1238
        %v1596 = vunpack.c.h.b16 %v1238
        %v1597 = vunpack.c.l.b16 %v1239
        %v1598 = vunpack.c.h.b16 %v1239
        %v1599 = vunpack.c.l.b16 %v1240
        %v1600 = vunpack.c.h.b16 %v1240
        %v1601 = vunpack.c.l.b16 %v1241
        %v1602 = vunpack.c.h.b16 %v1241
        %v1603 = vunpack.c.l.b16 %v1242
        %v1604 = vunpack.c.h.b16 %v1242
        %v1605 = vunpack.c.l.b16 %v1243
        %v1606 = vunpack.c.h.b16 %v1243
        %v1607 = vunpack.c.l.b16 %v1244
        %v1608 = vunpack.c.h.b16 %v1244
        %v1609 = vunpack.c.l.b16 %v1245
        %v1610 = vunpack.c.h.b16 %v1245
        %v1611 = vunpack.c.l.b16 %v1246
        %v1612 = vunpack.c.h.b16 %v1246
        %v1613 = vpack.c.b16 %v1551, %v1549
        %v1614 = vpack.c.b16 %v1552, %v1550
        %v1615 = vpack.c.b16 %v1555, %v1553
        %v1616 = vpack.c.b16 %v1556, %v1554
        %v1617 = vpack.c.b16 %v1559, %v1557
        %v1618 = vpack.c.b16 %v1560, %v1558
        %v1619 = vpack.c.b16 %v1563, %v1561
        %v1620 = vpack.c.b16 %v1564, %v1562
        %v1621 = vpack.c.b16 %v1567, %v1565
        %v1622 = vpack.c.b16 %v1568, %v1566
        %v1623 = vpack.c.b16 %v1571, %v1569
        %v1624 = vpack.c.b16 %v1572, %v1570
        %v1625 = vpack.c.b16 %v1575, %v1573
        %v1626 = vpack.c.b16 %v1576, %v1574
        %v1627 = vpack.c.b16 %v1579, %v1577
        %v1628 = vpack.c.b16 %v1580, %v1578
        %v1629 = vpack.c.b16 %v1583, %v1581
        %v1630 = vpack.c.b16 %v1584, %v1582
        %v1631 = vpack.c.b16 %v1587, %v1585
        %v1632 = vpack.c.b16 %v1588, %v1586
        %v1633 = vpack.c.b16 %v1591, %v1589
        %v1634 = vpack.c.b16 %v1592, %v1590
        %v1635 = vpack.c.b16 %v1595, %v1593
        %v1636 = vpack.c.b16 %v1596, %v1594
        %v1637 = vpack.c.b16 %v1599, %v1597
        %v1638 = vpack.c.b16 %v1600, %v1598
        %v1639 = vpack.c.b16 %v1603, %v1601
        %v1640 = vpack.c.b16 %v1604, %v1602
        %v1641 = vpack.c.b16 %v1607, %v1605
        %v1642 = vpack.c.b16 %v1608, %v1606
        %v1643 = vpack.c.b16 %v1611, %v1609
        %v1644 = vpack.c.b16 %v1612, %v1610
        %1677 = vmatprep.subr.bf16.mxu0 %v1614
        %1678 = vmatpush1.bf16.msra.mxu0 %v1613
        %1679 = vmatprep.subr.bf16.mxu0 %v1616
        %1680 = vmatpush1.bf16.msra.mxu0 %v1615
        %1681 = vmatprep.subr.bf16.mxu0 %v1618
        %1682 = vmatpush1.bf16.msra.mxu0 %v1617
        %1683 = vmatprep.subr.bf16.mxu0 %v1620
        %1684 = vmatpush1.bf16.msra.mxu0 %v1619
        %1685 = vmatprep.subr.bf16.mxu0 %v1622
        %1686 = vmatpush1.bf16.msra.mxu0 %v1621
        %1687 = vmatprep.subr.bf16.mxu0 %v1624
        %1688 = vmatpush1.bf16.msra.mxu0 %v1623
        %1689 = vmatprep.subr.bf16.mxu0 %v1626
        %1690 = vmatpush1.bf16.msra.mxu0 %v1625
        %1691 = vmatprep.subr.bf16.mxu0 %v1628
        %1692 = vmatpush1.bf16.msra.mxu0 %v1627
        %1693 = vmatprep.subr.bf16.mxu0 %v1630
        %1694 = vmatpush1.bf16.msra.mxu0 %v1629
        %1695 = vmatprep.subr.bf16.mxu0 %v1632
        %1696 = vmatpush1.bf16.msra.mxu0 %v1631
        %1697 = vmatprep.subr.bf16.mxu0 %v1634
        %1698 = vmatpush1.bf16.msra.mxu0 %v1633
        %1699 = vmatprep.subr.bf16.mxu0 %v1636
        %1700 = vmatpush1.bf16.msra.mxu0 %v1635
        %1701 = vmatprep.subr.bf16.mxu0 %v1638
        %1702 = vmatpush1.bf16.msra.mxu0 %v1637
        %1703 = vmatprep.subr.bf16.mxu0 %v1640
        %1704 = vmatpush1.bf16.msra.mxu0 %v1639
        %1705 = vmatprep.subr.bf16.mxu0 %v1642
        %1706 = vmatpush1.bf16.msra.mxu0 %v1641
        %1707 = vmatprep.subr.bf16.mxu0 %v1644
        %1708 = vmatpush1.bf16.msra.mxu0 %v1643
        %1709 = vmatprep.mubr.bf16.mxu0 %v1214
        %1710 = vmatmul.mubr.bf16.gmra.mrb[0].mxu0 %v1213
        %v1711 = vpop.f32.mrb[0].mxu0
        %v1712 = vadd.f32 %v1509, %v1711
        %v1713 = vpop.f32.mrb[0].mxu0
        %v1714 = vadd.f32 %v1511, %v1713
        %v1715 = vpop.f32.mrb[0].mxu0
        %v1716 = vadd.f32 %v1513, %v1715
        %v1717 = vpop.f32.mrb[0].mxu0
        %v1718 = vadd.f32 %v1515, %v1717
        %1719 = vdwg.mxu0
        %v1720 = vld [vmem:[#allocation2] sm:$0xfc]
        %v1721 = vld [vmem:[#allocation2 + $0x8] sm:$0xfc]
        %v1722 = vld [vmem:[#allocation2 + $0x20] sm:$0x3]
        %v1723 = vld [vmem:[#allocation2 + $0x28] sm:$0x3]
        %v1724 = vpack.c.bf16 %v1211, %v1720
        %v1725 = vpack.c.bf16 %v1212, %v1721
        %v1726 = vpack.c.bf16 %v1722, %v1722
        %v1727 = vpack.c.bf16 %v1723, %v1723
        %s1728 = scalar_lea.vmem [#allocation8], 512
        %v1729 = vld [vmem:[%s1728] sm:$0xff]
        %v1730 = vld [vmem:[%s1728 + $0x8] sm:$0xff]
        %v1731 = vld [vmem:[%s1728 + $0x10] sm:$0xff]
        %v1732 = vld [vmem:[%s1728 + $0x18] sm:$0xff]
        %v1733 = vld [vmem:[%s1728 + $0x20] sm:$0xff]
        %v1734 = vld [vmem:[%s1728 + $0x28] sm:$0xff]
        %v1735 = vld [vmem:[%s1728 + $0x30] sm:$0xff]
        %v1736 = vld [vmem:[%s1728 + $0x38] sm:$0xff]
        %v1737 = vld [vmem:[%s1728 + $0x40] sm:$0xff]
        %v1738 = vld [vmem:[%s1728 + $0x48] sm:$0xff]
        %v1739 = vld [vmem:[%s1728 + $0x50] sm:$0xff]
        %v1740 = vld [vmem:[%s1728 + $0x58] sm:$0xff]
        %v1741 = vld [vmem:[%s1728 + $0x60] sm:$0xff]
        %v1742 = vld [vmem:[%s1728 + $0x68] sm:$0xff]
        %v1743 = vld [vmem:[%s1728 + $0x70] sm:$0xff]
        %v1744 = vld [vmem:[%s1728 + $0x78] sm:$0xff]
        %v1745 = vld [vmem:[%s1728 + $0x80] sm:$0xff]
        %v1746 = vld [vmem:[%s1728 + $0x88] sm:$0xff]
        %v1747 = vld [vmem:[%s1728 + $0x90] sm:$0xff]
        %v1748 = vld [vmem:[%s1728 + $0x98] sm:$0xff]
        %v1749 = vld [vmem:[%s1728 + $0xa0] sm:$0xff]
        %v1750 = vld [vmem:[%s1728 + $0xa8] sm:$0xff]
        %v1751 = vld [vmem:[%s1728 + $0xb0] sm:$0xff]
        %v1752 = vld [vmem:[%s1728 + $0xb8] sm:$0xff]
        %v1753 = vld [vmem:[%s1728 + $0xc0] sm:$0xff]
        %v1754 = vld [vmem:[%s1728 + $0xc8] sm:$0xff]
        %v1755 = vld [vmem:[%s1728 + $0xd0] sm:$0xff]
        %v1756 = vld [vmem:[%s1728 + $0xd8] sm:$0xff]
        %v1757 = vld [vmem:[%s1728 + $0xe0] sm:$0xff]
        %v1758 = vld [vmem:[%s1728 + $0xe8] sm:$0xff]
        %v1759 = vld [vmem:[%s1728 + $0xf0] sm:$0xff]
        %v1760 = vld [vmem:[%s1728 + $0xf8] sm:$0xff]
        %v1765 = vrot.slane %v1724, 1
        %v1766 = vrot.slane %v1726, 1
        %v1767 = vsel %vm919, %v1765, %v1766
        %v1768 = vrot.slane %v1725, 1
        %v1769 = vrot.slane %v1727, 1
        %v1770 = vsel %vm919, %v1768, %v1769
        %v1805 = vunpack.c.l.b16 %v1729
        %v1806 = vunpack.c.h.b16 %v1729
        %v1807 = vunpack.c.l.b16 %v1730
        %v1808 = vunpack.c.h.b16 %v1730
        %v1809 = vunpack.c.l.b16 %v1731
        %v1810 = vunpack.c.h.b16 %v1731
        %v1811 = vunpack.c.l.b16 %v1732
        %v1812 = vunpack.c.h.b16 %v1732
        %v1813 = vunpack.c.l.b16 %v1733
        %v1814 = vunpack.c.h.b16 %v1733
        %v1815 = vunpack.c.l.b16 %v1734
        %v1816 = vunpack.c.h.b16 %v1734
        %v1817 = vunpack.c.l.b16 %v1735
        %v1818 = vunpack.c.h.b16 %v1735
        %v1819 = vunpack.c.l.b16 %v1736
        %v1820 = vunpack.c.h.b16 %v1736
        %v1821 = vunpack.c.l.b16 %v1737
        %v1822 = vunpack.c.h.b16 %v1737
        %v1823 = vunpack.c.l.b16 %v1738
        %v1824 = vunpack.c.h.b16 %v1738
        %v1825 = vunpack.c.l.b16 %v1739
        %v1826 = vunpack.c.h.b16 %v1739
        %v1827 = vunpack.c.l.b16 %v1740
        %v1828 = vunpack.c.h.b16 %v1740
        %v1829 = vunpack.c.l.b16 %v1741
        %v1830 = vunpack.c.h.b16 %v1741
        %v1831 = vunpack.c.l.b16 %v1742
        %v1832 = vunpack.c.h.b16 %v1742
        %v1833 = vunpack.c.l.b16 %v1743
        %v1834 = vunpack.c.h.b16 %v1743
        %v1835 = vunpack.c.l.b16 %v1744
        %v1836 = vunpack.c.h.b16 %v1744
        %v1837 = vunpack.c.l.b16 %v1745
        %v1838 = vunpack.c.h.b16 %v1745
        %v1839 = vunpack.c.l.b16 %v1746
        %v1840 = vunpack.c.h.b16 %v1746
        %v1841 = vunpack.c.l.b16 %v1747
        %v1842 = vunpack.c.h.b16 %v1747
        %v1843 = vunpack.c.l.b16 %v1748
        %v1844 = vunpack.c.h.b16 %v1748
        %v1845 = vunpack.c.l.b16 %v1749
        %v1846 = vunpack.c.h.b16 %v1749
        %v1847 = vunpack.c.l.b16 %v1750
        %v1848 = vunpack.c.h.b16 %v1750
        %v1849 = vunpack.c.l.b16 %v1751
        %v1850 = vunpack.c.h.b16 %v1751
        %v1851 = vunpack.c.l.b16 %v1752
        %v1852 = vunpack.c.h.b16 %v1752
        %v1853 = vunpack.c.l.b16 %v1753
        %v1854 = vunpack.c.h.b16 %v1753
        %v1855 = vunpack.c.l.b16 %v1754
        %v1856 = vunpack.c.h.b16 %v1754
        %v1857 = vunpack.c.l.b16 %v1755
        %v1858 = vunpack.c.h.b16 %v1755
        %v1859 = vunpack.c.l.b16 %v1756
        %v1860 = vunpack.c.h.b16 %v1756
        %v1861 = vunpack.c.l.b16 %v1757
        %v1862 = vunpack.c.h.b16 %v1757
        %v1863 = vunpack.c.l.b16 %v1758
        %v1864 = vunpack.c.h.b16 %v1758
        %v1865 = vunpack.c.l.b16 %v1759
        %v1866 = vunpack.c.h.b16 %v1759
        %v1867 = vunpack.c.l.b16 %v1760
        %v1868 = vunpack.c.h.b16 %v1760
        %v1869 = vpack.c.b16 %v1807, %v1805
        %v1870 = vpack.c.b16 %v1808, %v1806
        %v1871 = vpack.c.b16 %v1811, %v1809
        %v1872 = vpack.c.b16 %v1812, %v1810
        %v1873 = vpack.c.b16 %v1815, %v1813
        %v1874 = vpack.c.b16 %v1816, %v1814
        %v1875 = vpack.c.b16 %v1819, %v1817
        %v1876 = vpack.c.b16 %v1820, %v1818
        %v1877 = vpack.c.b16 %v1823, %v1821
        %v1878 = vpack.c.b16 %v1824, %v1822
        %v1879 = vpack.c.b16 %v1827, %v1825
        %v1880 = vpack.c.b16 %v1828, %v1826
        %v1881 = vpack.c.b16 %v1831, %v1829
        %v1882 = vpack.c.b16 %v1832, %v1830
        %v1883 = vpack.c.b16 %v1835, %v1833
        %v1884 = vpack.c.b16 %v1836, %v1834
        %v1885 = vpack.c.b16 %v1839, %v1837
        %v1886 = vpack.c.b16 %v1840, %v1838
        %v1887 = vpack.c.b16 %v1843, %v1841
        %v1888 = vpack.c.b16 %v1844, %v1842
        %v1889 = vpack.c.b16 %v1847, %v1845
        %v1890 = vpack.c.b16 %v1848, %v1846
        %v1891 = vpack.c.b16 %v1851, %v1849
        %v1892 = vpack.c.b16 %v1852, %v1850
        %v1893 = vpack.c.b16 %v1855, %v1853
        %v1894 = vpack.c.b16 %v1856, %v1854
        %v1895 = vpack.c.b16 %v1859, %v1857
        %v1896 = vpack.c.b16 %v1860, %v1858
        %v1897 = vpack.c.b16 %v1863, %v1861
        %v1898 = vpack.c.b16 %v1864, %v1862
        %v1899 = vpack.c.b16 %v1867, %v1865
        %v1900 = vpack.c.b16 %v1868, %v1866
        %1933 = vmatprep.subr.bf16.mxu0 %v1870
        %1934 = vmatpush1.bf16.msra.mxu0 %v1869
        %1935 = vmatprep.subr.bf16.mxu0 %v1872
        %1936 = vmatpush1.bf16.msra.mxu0 %v1871
        %1937 = vmatprep.subr.bf16.mxu0 %v1874
        %1938 = vmatpush1.bf16.msra.mxu0 %v1873
        %1939 = vmatprep.subr.bf16.mxu0 %v1876
        %1940 = vmatpush1.bf16.msra.mxu0 %v1875
        %1941 = vmatprep.subr.bf16.mxu0 %v1878
        %1942 = vmatpush1.bf16.msra.mxu0 %v1877
        %1943 = vmatprep.subr.bf16.mxu0 %v1880
        %1944 = vmatpush1.bf16.msra.mxu0 %v1879
        %1945 = vmatprep.subr.bf16.mxu0 %v1882
        %1946 = vmatpush1.bf16.msra.mxu0 %v1881
        %1947 = vmatprep.subr.bf16.mxu0 %v1884
        %1948 = vmatpush1.bf16.msra.mxu0 %v1883
        %1949 = vmatprep.subr.bf16.mxu0 %v1886
        %1950 = vmatpush1.bf16.msra.mxu0 %v1885
        %1951 = vmatprep.subr.bf16.mxu0 %v1888
        %1952 = vmatpush1.bf16.msra.mxu0 %v1887
        %1953 = vmatprep.subr.bf16.mxu0 %v1890
        %1954 = vmatpush1.bf16.msra.mxu0 %v1889
        %1955 = vmatprep.subr.bf16.mxu0 %v1892
        %1956 = vmatpush1.bf16.msra.mxu0 %v1891
        %1957 = vmatprep.subr.bf16.mxu0 %v1894
        %1958 = vmatpush1.bf16.msra.mxu0 %v1893
        %1959 = vmatprep.subr.bf16.mxu0 %v1896
        %1960 = vmatpush1.bf16.msra.mxu0 %v1895
        %1961 = vmatprep.subr.bf16.mxu0 %v1898
        %1962 = vmatpush1.bf16.msra.mxu0 %v1897
        %1963 = vmatprep.subr.bf16.mxu0 %v1900
        %1964 = vmatpush1.bf16.msra.mxu0 %v1899
        %1965 = vmatprep.mubr.bf16.mxu0 %v1770
        %1966 = vmatmul.mubr.bf16.gmra.mrb[0].mxu0 %v1767
        %v1967 = vpop.f32.mrb[0].mxu0
        %v1968 = vadd.f32 0.0, %v1967
        %v1969 = vpop.f32.mrb[0].mxu0
        %v1970 = vadd.f32 0.0, %v1969
        %v1971 = vpop.f32.mrb[0].mxu0
        %v1972 = vadd.f32 0.0, %v1971
        %v1973 = vpop.f32.mrb[0].mxu0
        %v1974 = vadd.f32 0.0, %v1973
        %1975 = vdwg.mxu0
        %v1976 = vadd.f32 %v1712, %v1968
        %v1977 = vadd.f32 %v1714, %v1970
        %v1978 = vadd.f32 %v1716, %v1972
        %v1979 = vadd.f32 %v1718, %v1974
        %v1980 = vld [vmem:[%s5] sm:$0x3]
        %v1982 = vlaneseq
        %v1983 = vshrl.u32 %v1982, 7
        %v1984 = vsub.s32 0, %v1983
        %v1985 = vrot.slane %v1980, %v1984
        %v1986 = vlaneseq
        %v1987 = vshrl.u32 %v1986, 7
        %v1988 = vsub.s32 1, %v1987
        %v1989 = vrot.slane %v1980, %v1988
        %v1992 = vmul.f32 %v1976, %v1985
        %v1993 = vmul.f32 %v1977, %v1989
        %v1994 = vmul.f32 %v1978, %v1985
        %v1995 = vmul.f32 %v1979, %v1989
        %v1996 = vld [vmem:[%s6] sm:$0x3]
        %v1998 = vlaneseq
        %v1999 = vshrl.u32 %v1998, 7
        %v2000 = vsub.s32 0, %v1999
        %v2001 = vrot.slane %v1996, %v2000
        %v2002 = vlaneseq
        %v2003 = vshrl.u32 %v2002, 7
        %v2004 = vsub.s32 1, %v2003
        %v2005 = vrot.slane %v1996, %v2004
        %v2008 = vadd.f32 %v1992, %v2001
        %v2009 = vadd.f32 %v1993, %v2005
        %v2010 = vadd.f32 %v1994, %v2001
        %v2011 = vadd.f32 %v1995, %v2005
        %v2012 = vadd.f32 %v2008, %v335
        %v2013 = vadd.f32 %v2009, %v336
        %v2014 = vadd.f32 %v2010, %v337
        %v2015 = vadd.f32 %v2011, %v338
        %v2016 = vadd.f32 %v2012, 0.0
        %v2017 = vadd.f32 %v2013, 0.0
        %v2018 = vadd.f32 %v2014, 0.0
        %v2019 = vadd.f32 %v2015, 0.0
        %v2020 = vadd.f32 %v2016, 0.0
        %v2021 = vadd.f32 %v2017, 0.0
        %v2022 = vadd.f32 %v2018, 0.0
        %v2023 = vadd.f32 %v2019, 0.0
        %vm2024 = vcmp.ge.f32.partialorder %v2020, 0.5
        %vm2025 = vcmp.ge.f32.partialorder %v2021, 0.5
        %vm2026 = vcmp.ge.f32.partialorder %v2022, 0.5
        %vm2027 = vcmp.ge.f32.partialorder %v2023, 0.5
        %v2028 = vsel %vm2024, 1, 0
        %v2029 = vsel %vm2025, 1, 0
        %v2030 = vsel %vm2026, 1, 0
        %v2031 = vsel %vm2027, 1, 0
        %v2032 = vcvt.s32.f32 %v2028
        %v2033 = vcvt.s32.f32 %v2029
        %v2034 = vcvt.s32.f32 %v2030
        %v2035 = vcvt.s32.f32 %v2031
        %2036 = vst [vmem:[%s325] sm:$0xff] %v2032
        %2037 = vst [vmem:[%s325 + $0x8] sm:$0xff] %v2033
        %2038 = vst [vmem:[%s325 + $0x10] sm:$0xff] %v2034
        %2039 = vst [vmem:[%s325 + $0x18] sm:$0xff] %v2035
        %s2040 = sand.u32 %s185, 1
        %s2041 = scalar_lea.sflag [#allocation5], %s2040
        %s2042 = sand.u32 %s185, 1
        %s2043 = smul.addr %s2042, 32
        %s2044 = scalar_lea.vmem [#allocation9], %s2043
        // Predicated region
        $region61: #{tpu_custom_call.1} parent=47 // pred_check
          %p2045 = pneg %p195
        $region62: #{tpu_custom_call.1} parent=47 // pred_check_branch
          %2047 = sbr.rel (%p2045) target = $region64
        $region63: #{tpu_custom_call.1} parent=47 // pred_region
          %s2049 = ssub.s32 512, 512
          %2050 = vsyncadd %s2041, %s2049
          %s2051 = smul.addr %s25, 4
          %s2052 = smul.addr %s2051, 128
          %s2053 = scalar_lea.hbm %s7, %s2052
          %s2054 = sshll.u32 %s2044, 4
          %s2055 = int_to_ptr.vmem [resolvable:$true] %s2054
          %2060 = dma.vmem_to_hbm [thread:$0]  %s2055, 512, %s2053, %s2041, 256, 256, 16
        $region64: #{tpu_custom_call.1} parent=47 // pred_fallthru
          _
      $region48: #{tpu_custom_call.1} parent=5 // pred_fallthru
        _
      %p2061 = scmp.le.s32.totalorder 2, %s20
      // Predicated region
      $region65: #{tpu_custom_call.1} parent=5 // pred_check
        %p2062 = pneg %p2061
      $region66: #{tpu_custom_call.1} parent=5 // pred_check_branch
        %2064 = sbr.rel (%p2062) target = $region68
      $region67: #{tpu_custom_call.1} parent=5 // pred_region
        %s2065 = ssub.s32 %s20, 2
        // Predicated region
        $region69: #{tpu_custom_call.1} parent=67 // pred_check
          %p2066 = pneg %p201
        $region70: #{tpu_custom_call.1} parent=67 // pred_check_branch
          %2068 = sbr.rel (%p2066) target = $region72
        $region71: #{tpu_custom_call.1} parent=67 // pred_region
          %s2069 = sand.u32 %s186, 1
          %s2070 = scalar_lea.sflag [#allocation5], %s2069
          %s2071 = sand.u32 %s186, 1
          %s2072 = smul.addr %s2071, 32
          %s2073 = scalar_lea.vmem [#allocation9], %s2072
          %2074 = dma.done %s2070, 512
        $region72: #{tpu_custom_call.1} parent=67 // pred_fallthru
          _
      $region68: #{tpu_custom_call.1} parent=5 // pred_fallthru
        _
    $region6: #{tpu_custom_call.1} parent=1 // loop_footer
      %s24 = sadd.s32 1, %s20
    $region7: #{tpu_custom_call.1} parent=1 // loop_footer_branch
      %19 = sbr.rel target = $region3
    $region8: #{tpu_custom_call.1} parent=1 // loop_exit
      _
    %2075 = vsyncpa [#allocation4], 1
    %s2076 = scalar_lea.sflag [#allocation4], 1
    %2077 = vsyncpa %s2076, 1
    %2078 = vsyncpa [#allocation7], 1
    %2079 = vsyncpa [#allocation5], 1
    %s2080 = scalar_lea.sflag [#allocation5], 1
    %2081 = vsyncpa %s2080, 1

</llo_original>
